<compile_context>
chip_gen: v7x
topology: tpu7x:2x2x1
jax: 0.10.0
libtpu: 0.0.40
codegen_flags: <defaults>
</compile_context>

<pallas_src>
import functools
import math

import jax
import jax.numpy as jnp
import numpy as np
from jax import lax
from jax.experimental import pallas as pl
from jax.experimental.pallas import tpu as pltpu

EPS = 1e-5  # nn.GroupNorm default eps


# ----------------------------- in-kernel math helpers ------------------------------------

def _erf(x):
    # Abramowitz & Stegun 7.1.26 polynomial (|err| < 1.5e-7).  Exact divide (not approx
    # reciprocal) so the kernel matches erf-GELU to f32-level accuracy.
    p = 0.3275911
    a1, a2, a3, a4, a5 = 0.254829592, -0.284496736, 1.421413741, -1.453152027, 1.061405429
    s = jnp.where(x >= 0.0, 1.0, -1.0)
    a = jnp.abs(x)
    t = 1.0 / (1.0 + p * a)
    poly = ((((a5 * t + a4) * t + a3) * t + a2) * t + a1) * t
    return s * (1.0 - poly * jnp.exp(-a * a))


def _gelu(x):
    # nn.GELU() default = exact (erf-based) GELU
    return 0.5 * x * (1.0 + _erf(x * 0.7071067811865476))


# ----------------------------------- Pallas kernel ---------------------------------------

def _basic_block_kernel(x_ref, w1_ref, g1g_ref, g1b_ref,
                        w2_ref, g2g_ref, g2b_ref,
                        w3_ref, b3_ref, o_ref, *, groups, use_conv3):
    # x_ref / o_ref: [C, L]  (channels on sublanes, length on lanes — lane-dense)
    Cin, L = x_ref.shape
    x = x_ref[...]                                             # f32

    # hoisted boundary masks (shared by both k=3 convs)
    lane = lax.broadcasted_iota(jnp.int32, (1, L), 1)
    mask_first = (lane != 0).astype(jnp.float32)               # l == 0 has no l-1 neighbor
    mask_last = (lane != L - 1).astype(jnp.float32)            # l == L-1 has no l+1 neighbor

    # ---- k=3 conv (pad=1, no bias): one f32 MXU matmul [Cout, 3C] x [3C, L] --------------
    def conv_k3(h, w_ref):
        h_m1 = pltpu.roll(h, 1, axis=1) * mask_first           # h[:, l-1], zeroed at l = 0
        h_p1 = pltpu.roll(h, L - 1, axis=1) * mask_last        # h[:, l+1], zeroed at l = L-1
        packed = jnp.concatenate([h_m1, h, h_p1], axis=0)      # [3*C, L], taps stacked on sublanes
        return jnp.dot(w_ref[...], packed, preferred_element_type=jnp.float32)

    # ---- GroupNorm: per-group VPU/XLU reductions over the contiguous sublane slab ---------
    def group_norm(h, gamma_ref, beta_ref):
        C = h.shape[0]
        cpg = C // groups                                       # sublane-tile aligned (asserted)
        inv_n = 1.0 / float(cpg * L)
        pieces = []
        for g in range(groups):                                 # static unroll, groups = Cin // 8
            slab = h[g * cpg:(g + 1) * cpg, :]                  # static sublane-tile slice
            mean = jnp.sum(jnp.sum(slab, axis=1, keepdims=True),
                           axis=0, keepdims=True) * inv_n       # [1, 1], exact f32
            hc = slab - mean
            var = jnp.sum(jnp.sum(hc * hc, axis=1, keepdims=True),
                          axis=0, keepdims=True) * inv_n        # two-pass centered variance
            pieces.append(hc * lax.rsqrt(var + EPS))
        hn = jnp.concatenate(pieces, axis=0) if groups > 1 else pieces[0]
        return hn * gamma_ref[...] + beta_ref[...]              # gamma/beta: [C, 1], lane-broadcast

    # ---- BasicBlock.forward ----------------------------------------------------------------
    out = conv_k3(x, w1_ref)                                    # conv1
    out = group_norm(out, g1g_ref, g1b_ref)                     # gn1
    out = _gelu(out)                                            # self.relu = nn.GELU()
    out = conv_k3(out, w2_ref)                                  # conv2
    out = group_norm(out, g2g_ref, g2b_ref)                     # gn2
    if use_conv3:                                               # conv3 (k=1, bias) iff inner != out
        out = jnp.dot(w3_ref[...], out, preferred_element_type=jnp.float32) + b3_ref[...]
    o_ref[...] = (out + x).astype(o_ref.dtype)                  # residual add, lane-dense store


# ------------------------------------ wrapper --------------------------------------------

def basic_block_pallas(x, params):
    B, Cin, L = x.shape
    c1_w, c2_w, c3_w = params["c1_w"], params["c2_w"], params["c3_w"]
    inner = c2_w.shape[0]
    out_ch = c3_w.shape[0]
    use_conv3 = (inner != out_ch)            # trace-time branch, same as the PyTorch module
    Cfin = out_ch if use_conv3 else inner
    assert Cfin == Cin, "residual add requires block output channels == in_channels"
    assert Cin % 8 == 0, "GroupNorm(in_channels // 8, ...) requires in_channels % 8 == 0"
    groups = Cin // 8
    assert inner % groups == 0, "GroupNorm requires inner_channel % groups == 0"
    # group slabs live on whole sublane tiles (keeps GroupNorm slices/concat free)
    assert (Cin // groups) % 8 == 0 and (inner // groups) % 8 == 0, \
        "channels-per-group must be a multiple of 8 (pad channels otherwise)"

    # pack each k=3 conv into a single [Cout, 3*Cin] tap-major matrix; everything stays f32
    w1p = jnp.transpose(c1_w, (0, 2, 1)).reshape(Cin, 3 * Cin).astype(jnp.float32)
    w2p = jnp.transpose(c2_w, (0, 2, 1)).reshape(inner, 3 * Cin).astype(jnp.float32)
    w3 = c3_w[:, :, 0].astype(jnp.float32)                       # [Cout, inner]
    b3 = params["c3_b"][:, None].astype(jnp.float32)             # [Cout, 1]
    g1g = params["gn1_g"][:, None].astype(jnp.float32)           # [C, 1] — lane-broadcast in kernel
    g1b = params["gn1_b"][:, None].astype(jnp.float32)
    g2g = params["gn2_g"][:, None].astype(jnp.float32)
    g2b = params["gn2_b"][:, None].astype(jnp.float32)

    def full2(a):                                                # small resident 2-D operand
        return pl.BlockSpec(a.shape, lambda b: (0, 0))

    kernel = functools.partial(_basic_block_kernel, groups=groups, use_conv3=use_conv3)

    # x consumed in its native (B, C, L) layout; one sample per grid step (batch dim squeezed),
    # so the in-kernel activation is already [C, L] with no transposes anywhere.
    return pl.pallas_call(
        kernel,
        out_shape=jax.ShapeDtypeStruct((B, Cfin, L), jnp.float32),
        grid_spec=pltpu.PrefetchScalarGridSpec(
            num_scalar_prefetch=0,
            grid=(B,),
            in_specs=[
                pl.BlockSpec((None, Cin, L), lambda b: (b, 0, 0)),
                full2(w1p), full2(g1g), full2(g1b),
                full2(w2p), full2(g2g), full2(g2b),
                full2(w3), full2(b3),
            ],
            out_specs=pl.BlockSpec((None, Cfin, L), lambda b: (b, 0, 0)),
        ),
        compiler_params=pltpu.CompilerParams(dimension_semantics=("parallel",)),
    )(x.astype(jnp.float32), w1p, g1g, g1b, w2p, g2g, g2b, w3, b3)


# -------------------------- deterministic parameter init ---------------------------------

def init_params(key, in_channels, inner_channel, out_channels):
    def w(k, shape, fan_in):
        bound = 1.0 / math.sqrt(fan_in)
        return jax.random.uniform(k, shape, jnp.float32, -bound, bound)

    k = jax.random.split(key, 8)
    return {
        "c1_w": w(k[0], (in_channels, in_channels, 3), in_channels * 3),
        "gn1_g": 1.0 + 0.1 * jax.random.normal(k[1], (in_channels,), jnp.float32),
        "gn1_b": 0.1 * jax.random.normal(k[2], (in_channels,), jnp.float32),
        "c2_w": w(k[3], (inner_channel, in_channels, 3), in_channels * 3),
        "gn2_g": 1.0 + 0.1 * jax.random.normal(k[4], (inner_channel,), jnp.float32),
        "gn2_b": 0.1 * jax.random.normal(k[5], (inner_channel,), jnp.float32),
        "c3_w": w(k[6], (out_channels, inner_channel, 1), inner_channel),
        "c3_b": w(k[7], (out_channels,), inner_channel),
    }


# ------------------------------- pure-JAX reference --------------------------------------

def ref_forward(x, params):
    def conv1d(h, wgt, b=None):
        pad = wgt.shape[2] // 2
        y = lax.conv_general_dilated(h, wgt, window_strides=(1,), padding=[(pad, pad)],
                                     dimension_numbers=("NCH", "OIH", "NCH"),
                                     precision=lax.Precision.HIGHEST)
        if b is not None:
            y = y + b[None, :, None]
        return y

    def gn(h, gamma, beta, groups):
        B, C, L = h.shape
        hg = h.reshape(B, groups, (C // groups) * L)
        m = hg.mean(axis=2, keepdims=True)
        v = ((hg - m) ** 2).mean(axis=2, keepdims=True)
        hn = ((hg - m) / jnp.sqrt(v + EPS)).reshape(B, C, L)
        return hn * gamma[None, :, None] + beta[None, :, None]

    groups = x.shape[1] // 8
    residual = x
    out = conv1d(x, params["c1_w"])
    out = gn(out, params["gn1_g"], params["gn1_b"], groups)
    out = jax.nn.gelu(out, approximate=False)
    out = conv1d(out, params["c2_w"])
    out = gn(out, params["gn2_g"], params["gn2_b"], groups)
    if params["c2_w"].shape[0] != params["c3_w"].shape[0]:
        out = conv1d(out, params["c3_w"], params["c3_b"])
    return out + residual


if __name__ == "__main__":
    # in_channels divisible by 8 (GroupNorm groups) and equal to the block output channels
    # (residual add); inner != out exercises the conv3 (1x1) path; L multiple of 128 for
    # lane-dense blocks; B >= 2 keeps both v7x TensorCores busy under the "parallel" grid.
    B, Cin, Cinner, Cout, L = 4, 16, 32, 16, 256
    key = jax.random.PRNGKey(0)
    kx, kp = jax.random.split(key)
    x = jax.random.normal(kx, (B, Cin, L), jnp.float32)
    params = init_params(kp, Cin, Cinner, Cout)

    y = jax.block_until_ready(basic_block_pallas(x, params))
    assert y.shape == (B, Cin, L)

    y_ref = ref_forward(x, params)
    # Kernel computes in f32 (expected agreement ~1e-5); the 2e-2 budget only covers possible
    # reduced-precision MXU passes for f32 matmuls across TPU generations.
    np.testing.assert_allclose(np.asarray(y), np.asarray(y_ref), atol=2e-2, rtol=2e-2)
    print("KERNEL_OK")
</pallas_src>

<mosaic_0001>
module attributes {stable_mosaic.version = 11 : i64} {
  func.func @_basic_block_kernel(%arg0: i32, %arg1: memref<1x16x256xf32, #tpu.memory_space<vmem>>, %arg2: memref<16x48xf32, #tpu.memory_space<vmem>>, %arg3: memref<16x1xf32, #tpu.memory_space<vmem>>, %arg4: memref<16x1xf32, #tpu.memory_space<vmem>>, %arg5: memref<32x48xf32, #tpu.memory_space<vmem>>, %arg6: memref<32x1xf32, #tpu.memory_space<vmem>>, %arg7: memref<32x1xf32, #tpu.memory_space<vmem>>, %arg8: memref<16x32xf32, #tpu.memory_space<vmem>>, %arg9: memref<16x1xf32, #tpu.memory_space<vmem>>, %arg10: memref<1x16x256xf32, #tpu.memory_space<vmem>>) attributes {dimension_semantics = [#tpu.dimension_semantics<parallel>], iteration_bounds = array<i64: 4>, scalar_prefetch = 0 : i64, scratch_operands = 0 : i64, tpu.core_type = #tpu.core_type<tc>, window_params = [{transform_indices = @transform_0, window_bounds = array<i64: 1, 16, 256>}, {pipeline_mode = #tpu.pipeline_mode<synchronous>, transform_indices = @transform_1, window_bounds = array<i64: 16, 48>}, {pipeline_mode = #tpu.pipeline_mode<synchronous>, transform_indices = @transform_2, window_bounds = array<i64: 16, 1>}, {pipeline_mode = #tpu.pipeline_mode<synchronous>, transform_indices = @transform_3, window_bounds = array<i64: 16, 1>}, {pipeline_mode = #tpu.pipeline_mode<synchronous>, transform_indices = @transform_4, window_bounds = array<i64: 32, 48>}, {pipeline_mode = #tpu.pipeline_mode<synchronous>, transform_indices = @transform_5, window_bounds = array<i64: 32, 1>}, {pipeline_mode = #tpu.pipeline_mode<synchronous>, transform_indices = @transform_6, window_bounds = array<i64: 32, 1>}, {pipeline_mode = #tpu.pipeline_mode<synchronous>, transform_indices = @transform_7, window_bounds = array<i64: 16, 32>}, {pipeline_mode = #tpu.pipeline_mode<synchronous>, transform_indices = @transform_8, window_bounds = array<i64: 16, 1>}, {transform_indices = @transform_9, window_bounds = array<i64: 1, 16, 256>}]} {
    %c0 = arith.constant 0 : index
    %c0_0 = arith.constant 0 : index
    %c0_1 = arith.constant 0 : index
    %0 = vector.load %arg1[%c0, %c0_0, %c0_1] : memref<1x16x256xf32, #tpu.memory_space<vmem>>, vector<1x16x256xf32>
    %1 = vector.shape_cast %0 : vector<1x16x256xf32> to vector<16x256xf32>
    %2 = tpu.iota {dimensions = array<i32: 1>} : vector<1x256xi32>
    %c0_i32 = arith.constant 0 : i32
    %3 = vector.broadcast %c0_i32 : i32 to vector<1x256xi32>
    %4 = arith.cmpi ne, %2, %3 : vector<1x256xi32>
    %5 = arith.extui %4 : vector<1x256xi1> to vector<1x256xi32>
    %6 = arith.sitofp %5 : vector<1x256xi32> to vector<1x256xf32>
    %c255_i32 = arith.constant 255 : i32
    %7 = vector.broadcast %c255_i32 : i32 to vector<1x256xi32>
    %8 = arith.cmpi ne, %2, %7 : vector<1x256xi32>
    %9 = arith.extui %8 : vector<1x256xi1> to vector<1x256xi32>
    %10 = arith.sitofp %9 : vector<1x256xi32> to vector<1x256xf32>
    %c1_i32 = arith.constant 1 : i32
    %11 = tpu.dynamic_rotate %1 by %c1_i32 dim 1 : vector<16x256xf32>, i32 -> vector<16x256xf32>
    %12 = vector.broadcast %6 : vector<1x256xf32> to vector<16x256xf32>
    %13 = arith.mulf %11, %12 : vector<16x256xf32>
    %c255_i32_2 = arith.constant 255 : i32
    %14 = tpu.dynamic_rotate %1 by %c255_i32_2 dim 1 : vector<16x256xf32>, i32 -> vector<16x256xf32>
    %15 = vector.broadcast %10 : vector<1x256xf32> to vector<16x256xf32>
    %16 = arith.mulf %14, %15 : vector<16x256xf32>
    %17 = tpu.concatenate %13, %1, %16 in 0 : vector<16x256xf32>, vector<16x256xf32>, vector<16x256xf32> -> vector<48x256xf32>
    %c0_3 = arith.constant 0 : index
    %c0_4 = arith.constant 0 : index
    %18 = vector.load %arg2[%c0_3, %c0_4] : memref<16x48xf32, #tpu.memory_space<vmem>>, vector<16x48xf32>
    %cst = arith.constant dense<0.000000e+00> : vector<16x256xf32>
    %19 = tpu.matmul %18, %17, %cst {dimension_numbers = #tpu.dot_dimension_numbers<[1], [0], [0], [1], [0, 0, 1, 1], [], []>} : vector<16x48xf32>, vector<48x256xf32>, vector<16x256xf32> -> vector<16x256xf32>
    %20 = vector.extract_strided_slice %19 {offsets = [0, 0], sizes = [8, 256], strides = [1, 1]} : vector<16x256xf32> to vector<8x256xf32>
    %cst_5 = arith.constant dense<0.000000e+00> : vector<8xf32>
    %21 = vector.multi_reduction <add>, %20, %cst_5 [1] : vector<8x256xf32> to vector<8xf32>
    %22 = vector.shape_cast %21 : vector<8xf32> to vector<8x1xf32>
    %cst_6 = arith.constant dense<0.000000e+00> : vector<1xf32>
    %23 = vector.multi_reduction <add>, %22, %cst_6 [0] : vector<8x1xf32> to vector<1xf32>
    %24 = vector.shape_cast %23 : vector<1xf32> to vector<1x1xf32>
    %cst_7 = arith.constant 4.8828125E-4 : f32
    %25 = vector.broadcast %cst_7 : f32 to vector<1x1xf32>
    %26 = arith.mulf %24, %25 : vector<1x1xf32>
    %27 = vector.broadcast %26 : vector<1x1xf32> to vector<8x256xf32>
    %28 = arith.subf %20, %27 : vector<8x256xf32>
    %29 = arith.mulf %28, %28 : vector<8x256xf32>
    %cst_8 = arith.constant dense<0.000000e+00> : vector<8xf32>
    %30 = vector.multi_reduction <add>, %29, %cst_8 [1] : vector<8x256xf32> to vector<8xf32>
    %31 = vector.shape_cast %30 : vector<8xf32> to vector<8x1xf32>
    %cst_9 = arith.constant dense<0.000000e+00> : vector<1xf32>
    %32 = vector.multi_reduction <add>, %31, %cst_9 [0] : vector<8x1xf32> to vector<1xf32>
    %33 = vector.shape_cast %32 : vector<1xf32> to vector<1x1xf32>
    %cst_10 = arith.constant 4.8828125E-4 : f32
    %34 = vector.broadcast %cst_10 : f32 to vector<1x1xf32>
    %35 = arith.mulf %33, %34 : vector<1x1xf32>
    %cst_11 = arith.constant 9.99999974E-6 : f32
    %36 = vector.broadcast %cst_11 : f32 to vector<1x1xf32>
    %37 = arith.addf %35, %36 : vector<1x1xf32>
    %38 = math.rsqrt %37 : vector<1x1xf32>
    %39 = vector.broadcast %38 : vector<1x1xf32> to vector<8x256xf32>
    %40 = arith.mulf %28, %39 : vector<8x256xf32>
    %41 = vector.extract_strided_slice %19 {offsets = [8, 0], sizes = [8, 256], strides = [1, 1]} : vector<16x256xf32> to vector<8x256xf32>
    %cst_12 = arith.constant dense<0.000000e+00> : vector<8xf32>
    %42 = vector.multi_reduction <add>, %41, %cst_12 [1] : vector<8x256xf32> to vector<8xf32>
    %43 = vector.shape_cast %42 : vector<8xf32> to vector<8x1xf32>
    %cst_13 = arith.constant dense<0.000000e+00> : vector<1xf32>
    %44 = vector.multi_reduction <add>, %43, %cst_13 [0] : vector<8x1xf32> to vector<1xf32>
    %45 = vector.shape_cast %44 : vector<1xf32> to vector<1x1xf32>
    %cst_14 = arith.constant 4.8828125E-4 : f32
    %46 = vector.broadcast %cst_14 : f32 to vector<1x1xf32>
    %47 = arith.mulf %45, %46 : vector<1x1xf32>
    %48 = vector.broadcast %47 : vector<1x1xf32> to vector<8x256xf32>
    %49 = arith.subf %41, %48 : vector<8x256xf32>
    %50 = arith.mulf %49, %49 : vector<8x256xf32>
    %cst_15 = arith.constant dense<0.000000e+00> : vector<8xf32>
    %51 = vector.multi_reduction <add>, %50, %cst_15 [1] : vector<8x256xf32> to vector<8xf32>
    %52 = vector.shape_cast %51 : vector<8xf32> to vector<8x1xf32>
    %cst_16 = arith.constant dense<0.000000e+00> : vector<1xf32>
    %53 = vector.multi_reduction <add>, %52, %cst_16 [0] : vector<8x1xf32> to vector<1xf32>
    %54 = vector.shape_cast %53 : vector<1xf32> to vector<1x1xf32>
    %cst_17 = arith.constant 4.8828125E-4 : f32
    %55 = vector.broadcast %cst_17 : f32 to vector<1x1xf32>
    %56 = arith.mulf %54, %55 : vector<1x1xf32>
    %cst_18 = arith.constant 9.99999974E-6 : f32
    %57 = vector.broadcast %cst_18 : f32 to vector<1x1xf32>
    %58 = arith.addf %56, %57 : vector<1x1xf32>
    %59 = math.rsqrt %58 : vector<1x1xf32>
    %60 = vector.broadcast %59 : vector<1x1xf32> to vector<8x256xf32>
    %61 = arith.mulf %49, %60 : vector<8x256xf32>
    %62 = tpu.concatenate %40, %61 in 0 : vector<8x256xf32>, vector<8x256xf32> -> vector<16x256xf32>
    %c0_19 = arith.constant 0 : index
    %c0_20 = arith.constant 0 : index
    %63 = vector.load %arg3[%c0_19, %c0_20] : memref<16x1xf32, #tpu.memory_space<vmem>>, vector<16x1xf32>
    %64 = vector.broadcast %63 : vector<16x1xf32> to vector<16x256xf32>
    %65 = arith.mulf %62, %64 : vector<16x256xf32>
    %c0_21 = arith.constant 0 : index
    %c0_22 = arith.constant 0 : index
    %66 = vector.load %arg4[%c0_21, %c0_22] : memref<16x1xf32, #tpu.memory_space<vmem>>, vector<16x1xf32>
    %67 = vector.broadcast %66 : vector<16x1xf32> to vector<16x256xf32>
    %68 = arith.addf %65, %67 : vector<16x256xf32>
    %cst_23 = arith.constant 5.000000e-01 : f32
    %69 = vector.broadcast %cst_23 : f32 to vector<16x256xf32>
    %70 = arith.mulf %69, %68 : vector<16x256xf32>
    %cst_24 = arith.constant 0.707106769 : f32
    %71 = vector.broadcast %cst_24 : f32 to vector<16x256xf32>
    %72 = arith.mulf %68, %71 : vector<16x256xf32>
    %cst_25 = arith.constant 0.000000e+00 : f32
    %73 = vector.broadcast %cst_25 : f32 to vector<16x256xf32>
    %74 = arith.cmpf oge, %72, %73 : vector<16x256xf32>
    %cst_26 = arith.constant 1.000000e+00 : f32
    %cst_27 = arith.constant -1.000000e+00 : f32
    %75 = vector.broadcast %cst_26 : f32 to vector<16x256xf32>
    %76 = vector.broadcast %cst_27 : f32 to vector<16x256xf32>
    %77 = arith.select %74, %75, %76 : vector<16x256xi1>, vector<16x256xf32>
    %78 = math.absf %72 : vector<16x256xf32>
    %cst_28 = arith.constant 0.327591091 : f32
    %79 = vector.broadcast %cst_28 : f32 to vector<16x256xf32>
    %80 = arith.mulf %79, %78 : vector<16x256xf32>
    %cst_29 = arith.constant 1.000000e+00 : f32
    %81 = vector.broadcast %cst_29 : f32 to vector<16x256xf32>
    %82 = arith.addf %81, %80 : vector<16x256xf32>
    %cst_30 = arith.constant 1.000000e+00 : f32
    %83 = vector.broadcast %cst_30 : f32 to vector<16x256xf32>
    %84 = arith.divf %83, %82 : vector<16x256xf32>
    %cst_31 = arith.constant 1.06140542 : f32
    %85 = vector.broadcast %cst_31 : f32 to vector<16x256xf32>
    %86 = arith.mulf %85, %84 : vector<16x256xf32>
    %cst_32 = arith.constant -1.45315206 : f32
    %87 = vector.broadcast %cst_32 : f32 to vector<16x256xf32>
    %88 = arith.addf %86, %87 : vector<16x256xf32>
    %89 = arith.mulf %88, %84 : vector<16x256xf32>
    %cst_33 = arith.constant 1.42141378 : f32
    %90 = vector.broadcast %cst_33 : f32 to vector<16x256xf32>
    %91 = arith.addf %89, %90 : vector<16x256xf32>
    %92 = arith.mulf %91, %84 : vector<16x256xf32>
    %cst_34 = arith.constant -0.284496725 : f32
    %93 = vector.broadcast %cst_34 : f32 to vector<16x256xf32>
    %94 = arith.addf %92, %93 : vector<16x256xf32>
    %95 = arith.mulf %94, %84 : vector<16x256xf32>
    %cst_35 = arith.constant 0.254829586 : f32
    %96 = vector.broadcast %cst_35 : f32 to vector<16x256xf32>
    %97 = arith.addf %95, %96 : vector<16x256xf32>
    %98 = arith.mulf %97, %84 : vector<16x256xf32>
    %cst_36 = arith.constant 0.000000e+00 : f32
    %99 = vector.broadcast %cst_36 : f32 to vector<16x256xf32>
    %100 = arith.subf %99, %78 : vector<16x256xf32>
    %101 = arith.mulf %100, %78 : vector<16x256xf32>
    %102 = math.exp %101 : vector<16x256xf32>
    %103 = arith.mulf %98, %102 : vector<16x256xf32>
    %cst_37 = arith.constant 1.000000e+00 : f32
    %104 = vector.broadcast %cst_37 : f32 to vector<16x256xf32>
    %105 = arith.subf %104, %103 : vector<16x256xf32>
    %106 = arith.mulf %77, %105 : vector<16x256xf32>
    %cst_38 = arith.constant 1.000000e+00 : f32
    %107 = vector.broadcast %cst_38 : f32 to vector<16x256xf32>
    %108 = arith.addf %107, %106 : vector<16x256xf32>
    %109 = arith.mulf %70, %108 : vector<16x256xf32>
    %c1_i32_39 = arith.constant 1 : i32
    %110 = tpu.dynamic_rotate %109 by %c1_i32_39 dim 1 : vector<16x256xf32>, i32 -> vector<16x256xf32>
    %111 = vector.broadcast %6 : vector<1x256xf32> to vector<16x256xf32>
    %112 = arith.mulf %110, %111 : vector<16x256xf32>
    %c255_i32_40 = arith.constant 255 : i32
    %113 = tpu.dynamic_rotate %109 by %c255_i32_40 dim 1 : vector<16x256xf32>, i32 -> vector<16x256xf32>
    %114 = vector.broadcast %10 : vector<1x256xf32> to vector<16x256xf32>
    %115 = arith.mulf %113, %114 : vector<16x256xf32>
    %116 = tpu.concatenate %112, %109, %115 in 0 : vector<16x256xf32>, vector<16x256xf32>, vector<16x256xf32> -> vector<48x256xf32>
    %c0_41 = arith.constant 0 : index
    %c0_42 = arith.constant 0 : index
    %117 = vector.load %arg5[%c0_41, %c0_42] : memref<32x48xf32, #tpu.memory_space<vmem>>, vector<32x48xf32>
    %cst_43 = arith.constant dense<0.000000e+00> : vector<32x256xf32>
    %118 = tpu.matmul %117, %116, %cst_43 {dimension_numbers = #tpu.dot_dimension_numbers<[1], [0], [0], [1], [0, 0, 1, 1], [], []>} : vector<32x48xf32>, vector<48x256xf32>, vector<32x256xf32> -> vector<32x256xf32>
    %119 = vector.extract_strided_slice %118 {offsets = [0, 0], sizes = [16, 256], strides = [1, 1]} : vector<32x256xf32> to vector<16x256xf32>
    %cst_44 = arith.constant dense<0.000000e+00> : vector<16xf32>
    %120 = vector.multi_reduction <add>, %119, %cst_44 [1] : vector<16x256xf32> to vector<16xf32>
    %121 = vector.shape_cast %120 : vector<16xf32> to vector<16x1xf32>
    %cst_45 = arith.constant dense<0.000000e+00> : vector<1xf32>
    %122 = vector.multi_reduction <add>, %121, %cst_45 [0] : vector<16x1xf32> to vector<1xf32>
    %123 = vector.shape_cast %122 : vector<1xf32> to vector<1x1xf32>
    %cst_46 = arith.constant 2.44140625E-4 : f32
    %124 = vector.broadcast %cst_46 : f32 to vector<1x1xf32>
    %125 = arith.mulf %123, %124 : vector<1x1xf32>
    %126 = vector.broadcast %125 : vector<1x1xf32> to vector<16x256xf32>
    %127 = arith.subf %119, %126 : vector<16x256xf32>
    %128 = arith.mulf %127, %127 : vector<16x256xf32>
    %cst_47 = arith.constant dense<0.000000e+00> : vector<16xf32>
    %129 = vector.multi_reduction <add>, %128, %cst_47 [1] : vector<16x256xf32> to vector<16xf32>
    %130 = vector.shape_cast %129 : vector<16xf32> to vector<16x1xf32>
    %cst_48 = arith.constant dense<0.000000e+00> : vector<1xf32>
    %131 = vector.multi_reduction <add>, %130, %cst_48 [0] : vector<16x1xf32> to vector<1xf32>
    %132 = vector.shape_cast %131 : vector<1xf32> to vector<1x1xf32>
    %cst_49 = arith.constant 2.44140625E-4 : f32
    %133 = vector.broadcast %cst_49 : f32 to vector<1x1xf32>
    %134 = arith.mulf %132, %133 : vector<1x1xf32>
    %cst_50 = arith.constant 9.99999974E-6 : f32
    %135 = vector.broadcast %cst_50 : f32 to vector<1x1xf32>
    %136 = arith.addf %134, %135 : vector<1x1xf32>
    %137 = math.rsqrt %136 : vector<1x1xf32>
    %138 = vector.broadcast %137 : vector<1x1xf32> to vector<16x256xf32>
    %139 = arith.mulf %127, %138 : vector<16x256xf32>
    %140 = vector.extract_strided_slice %118 {offsets = [16, 0], sizes = [16, 256], strides = [1, 1]} : vector<32x256xf32> to vector<16x256xf32>
    %cst_51 = arith.constant dense<0.000000e+00> : vector<16xf32>
    %141 = vector.multi_reduction <add>, %140, %cst_51 [1] : vector<16x256xf32> to vector<16xf32>
    %142 = vector.shape_cast %141 : vector<16xf32> to vector<16x1xf32>
    %cst_52 = arith.constant dense<0.000000e+00> : vector<1xf32>
    %143 = vector.multi_reduction <add>, %142, %cst_52 [0] : vector<16x1xf32> to vector<1xf32>
    %144 = vector.shape_cast %143 : vector<1xf32> to vector<1x1xf32>
    %cst_53 = arith.constant 2.44140625E-4 : f32
    %145 = vector.broadcast %cst_53 : f32 to vector<1x1xf32>
    %146 = arith.mulf %144, %145 : vector<1x1xf32>
    %147 = vector.broadcast %146 : vector<1x1xf32> to vector<16x256xf32>
    %148 = arith.subf %140, %147 : vector<16x256xf32>
    %149 = arith.mulf %148, %148 : vector<16x256xf32>
    %cst_54 = arith.constant dense<0.000000e+00> : vector<16xf32>
    %150 = vector.multi_reduction <add>, %149, %cst_54 [1] : vector<16x256xf32> to vector<16xf32>
    %151 = vector.shape_cast %150 : vector<16xf32> to vector<16x1xf32>
    %cst_55 = arith.constant dense<0.000000e+00> : vector<1xf32>
    %152 = vector.multi_reduction <add>, %151, %cst_55 [0] : vector<16x1xf32> to vector<1xf32>
    %153 = vector.shape_cast %152 : vector<1xf32> to vector<1x1xf32>
    %cst_56 = arith.constant 2.44140625E-4 : f32
    %154 = vector.broadcast %cst_56 : f32 to vector<1x1xf32>
    %155 = arith.mulf %153, %154 : vector<1x1xf32>
    %cst_57 = arith.constant 9.99999974E-6 : f32
    %156 = vector.broadcast %cst_57 : f32 to vector<1x1xf32>
    %157 = arith.addf %155, %156 : vector<1x1xf32>
    %158 = math.rsqrt %157 : vector<1x1xf32>
    %159 = vector.broadcast %158 : vector<1x1xf32> to vector<16x256xf32>
    %160 = arith.mulf %148, %159 : vector<16x256xf32>
    %161 = tpu.concatenate %139, %160 in 0 : vector<16x256xf32>, vector<16x256xf32> -> vector<32x256xf32>
    %c0_58 = arith.constant 0 : index
    %c0_59 = arith.constant 0 : index
    %162 = vector.load %arg6[%c0_58, %c0_59] : memref<32x1xf32, #tpu.memory_space<vmem>>, vector<32x1xf32>
    %163 = vector.broadcast %162 : vector<32x1xf32> to vector<32x256xf32>
    %164 = arith.mulf %161, %163 : vector<32x256xf32>
    %c0_60 = arith.constant 0 : index
    %c0_61 = arith.constant 0 : index
    %165 = vector.load %arg7[%c0_60, %c0_61] : memref<32x1xf32, #tpu.memory_space<vmem>>, vector<32x1xf32>
    %166 = vector.broadcast %165 : vector<32x1xf32> to vector<32x256xf32>
    %167 = arith.addf %164, %166 : vector<32x256xf32>
    %c0_62 = arith.constant 0 : index
    %c0_63 = arith.constant 0 : index
    %168 = vector.load %arg8[%c0_62, %c0_63] : memref<16x32xf32, #tpu.memory_space<vmem>>, vector<16x32xf32>
    %cst_64 = arith.constant dense<0.000000e+00> : vector<16x256xf32>
    %169 = tpu.matmul %168, %167, %cst_64 {dimension_numbers = #tpu.dot_dimension_numbers<[1], [0], [0], [1], [0, 0, 1, 1], [], []>} : vector<16x32xf32>, vector<32x256xf32>, vector<16x256xf32> -> vector<16x256xf32>
    %c0_65 = arith.constant 0 : index
    %c0_66 = arith.constant 0 : index
    %170 = vector.load %arg9[%c0_65, %c0_66] : memref<16x1xf32, #tpu.memory_space<vmem>>, vector<16x1xf32>
    %171 = vector.broadcast %170 : vector<16x1xf32> to vector<16x256xf32>
    %172 = arith.addf %169, %171 : vector<16x256xf32>
    %173 = arith.addf %172, %1 : vector<16x256xf32>
    %c0_67 = arith.constant 0 : index
    %c0_68 = arith.constant 0 : index
    %c0_69 = arith.constant 0 : index
    %174 = vector.load %arg10[%c0_67, %c0_68, %c0_69] : memref<1x16x256xf32, #tpu.memory_space<vmem>>, vector<1x16x256xf32>
    %175 = vector.shape_cast %174 : vector<1x16x256xf32> to vector<16x256xf32>
    %176 = vector.shape_cast %173 : vector<16x256xf32> to vector<1x16x256xf32>
    tpu.vector_store %arg10[%c0_67, %c0_68, %c0_69], %176 {strides = array<i32>} : memref<1x16x256xf32, #tpu.memory_space<vmem>>, vector<1x16x256xf32>,
    return
  }
  func.func @transform_0(%arg0: i32) -> (i32, i32, i32) {
    %c0_i32 = arith.constant 0 : i32
    %c0_i32_0 = arith.constant 0 : i32
    %c0_i32_1 = arith.constant 0 : i32
    return %arg0, %c0_i32, %c0_i32_0 : i32, i32, i32
  }
  func.func @transform_1(%arg0: i32) -> (i32, i32) {
    %c0_i32 = arith.constant 0 : i32
    %c0_i32_0 = arith.constant 0 : i32
    %c0_i32_1 = arith.constant 0 : i32
    return %c0_i32, %c0_i32_0 : i32, i32
  }
  func.func @transform_2(%arg0: i32) -> (i32, i32) {
    %c0_i32 = arith.constant 0 : i32
    %c0_i32_0 = arith.constant 0 : i32
    %c0_i32_1 = arith.constant 0 : i32
    return %c0_i32, %c0_i32_0 : i32, i32
  }
  func.func @transform_3(%arg0: i32) -> (i32, i32) {
    %c0_i32 = arith.constant 0 : i32
    %c0_i32_0 = arith.constant 0 : i32
    %c0_i32_1 = arith.constant 0 : i32
    return %c0_i32, %c0_i32_0 : i32, i32
  }
  func.func @transform_4(%arg0: i32) -> (i32, i32) {
    %c0_i32 = arith.constant 0 : i32
    %c0_i32_0 = arith.constant 0 : i32
    %c0_i32_1 = arith.constant 0 : i32
    return %c0_i32, %c0_i32_0 : i32, i32
  }
  func.func @transform_5(%arg0: i32) -> (i32, i32) {
    %c0_i32 = arith.constant 0 : i32
    %c0_i32_0 = arith.constant 0 : i32
    %c0_i32_1 = arith.constant 0 : i32
    return %c0_i32, %c0_i32_0 : i32, i32
  }
  func.func @transform_6(%arg0: i32) -> (i32, i32) {
    %c0_i32 = arith.constant 0 : i32
    %c0_i32_0 = arith.constant 0 : i32
    %c0_i32_1 = arith.constant 0 : i32
    return %c0_i32, %c0_i32_0 : i32, i32
  }
  func.func @transform_7(%arg0: i32) -> (i32, i32) {
    %c0_i32 = arith.constant 0 : i32
    %c0_i32_0 = arith.constant 0 : i32
    %c0_i32_1 = arith.constant 0 : i32
    return %c0_i32, %c0_i32_0 : i32, i32
  }
  func.func @transform_8(%arg0: i32) -> (i32, i32) {
    %c0_i32 = arith.constant 0 : i32
    %c0_i32_0 = arith.constant 0 : i32
    %c0_i32_1 = arith.constant 0 : i32
    return %c0_i32, %c0_i32_0 : i32, i32
  }
  func.func @transform_9(%arg0: i32) -> (i32, i32, i32) {
    %c0_i32 = arith.constant 0 : i32
    %c0_i32_0 = arith.constant 0 : i32
    %c0_i32_1 = arith.constant 0 : i32
    return %arg0, %c0_i32, %c0_i32_0 : i32, i32, i32
  }
}

</mosaic_0001>

<llo_original>
// kernel: tpu_custom_call.1
$region0: #{tpu_custom_call.1}
  #allocation0 [shape = 'u32[]', space=smem, size = 0x4, offset = 0x4, fixed_abs, tag = 'smem constant byte address 0x4 - core index']
  #allocation1 [shape = 'u32[144,128]{1,0:T(1,128)}', space=vmem, size = 0x12000, scoped, tag = 'internal scratch']
  %s0 = inlined_call_operand.hbm [shape: f32[4,16,256], index: 0, kind: input, shape index: {}]
  %s1 = inlined_call_operand.vmem [shape: f32[16,48], index: 1, kind: input, shape index: {}]
  %s2 = inlined_call_operand.vmem [shape: f32[16,1], index: 2, kind: input, shape index: {}]
  %s3 = inlined_call_operand.vmem [shape: f32[16,1], index: 3, kind: input, shape index: {}]
  %s4 = inlined_call_operand.vmem [shape: f32[32,48], index: 4, kind: input, shape index: {}]
  %s5 = inlined_call_operand.vmem [shape: f32[32,1], index: 5, kind: input, shape index: {}]
  %s6 = inlined_call_operand.vmem [shape: f32[32,1], index: 6, kind: input, shape index: {}]
  %s7 = inlined_call_operand.vmem [shape: f32[16,32], index: 7, kind: input, shape index: {}]
  %s8 = inlined_call_operand.vmem [shape: f32[16,1], index: 8, kind: input, shape index: {}]
  %s9 = inlined_call_operand.hbm [shape: f32[4,16,256], index: 9, kind: output, shape index: {}]
  %s10 = sld [smem:[#allocation0]]
  $region73: #{tpu_custom_call.1} parent=0
    _
  %s12 = ssub.s32 1, %s10
  %s13 = scalar_select 0, %s12, %s10
  $region1: #{tpu_custom_call.1} parent=0
    #allocation2 [shape = 'u8[32768]{0}', space=vmem, size = 0x8000, scoped, tag = 'input window, operand 0']
    #allocation3 [shape = 's32[2]{0}', space=sflag, size = 0x8, scoped, tag = 'scoped memory for tpu_custom_call.1']
    #allocation4 [shape = 's32[2]{0}', space=sflag, size = 0x8, scoped, tag = 'scoped memory for tpu_custom_call.1']
    #allocation5 [shape = 'u8[32768]{0}', space=vmem, size = 0x8000, scoped, tag = 'output window, operand 0']
    %14 = vsyncpa [#allocation3], 0
    %s15 = scalar_lea.sflag [#allocation3], 1
    %16 = vsyncpa %s15, 0
    %17 = vsyncpa [#allocation4], 0
    %s18 = scalar_lea.sflag [#allocation4], 1
    %19 = vsyncpa %s18, 0
    loop: start=0, step=1, limit=6
    $region2: #{tpu_custom_call.1} parent=1 // loop_pre_header
      _
    $region3: #{tpu_custom_call.1} parent=1 // loop_header
      %s21 = sphi 0, %s25
      %p22 = scmp.ge.s32.totalorder %s21, 6
      %s31 = sphi 0, %s33
      %s34 = sphi 0, %s31
      %s35 = sphi 0, %s34
      %s51 = sphi 0, %s35
      %s55 = sphi 0, %s55
      %s57 = sphi 0, %s55
      %s58 = sphi 0, %s57
      %s72 = sphi 0, %s58
      %s76 = sphi 0, %s76
      %s78 = sphi 0, %s76
      %s79 = sphi 0, %s78
      %s93 = sphi 0, %s79
      %s97 = sphi 0, %s97
      %s99 = sphi 0, %s97
      %s100 = sphi 0, %s99
      %s114 = sphi 0, %s100
      %s118 = sphi 0, %s118
      %s120 = sphi 0, %s118
      %s121 = sphi 0, %s120
      %s135 = sphi 0, %s121
      %s139 = sphi 0, %s139
      %s141 = sphi 0, %s139
      %s142 = sphi 0, %s141
      %s156 = sphi 0, %s142
      %s160 = sphi 0, %s160
      %s162 = sphi 0, %s160
      %s163 = sphi 0, %s162
      %s177 = sphi 0, %s163
      %s181 = sphi 0, %s181
      %s183 = sphi 0, %s181
      %s184 = sphi 0, %s183
      %s198 = sphi 0, %s184
      %s202 = sphi 0, %s202
      %s204 = sphi 0, %s202
      %s205 = sphi 0, %s204
      %s219 = sphi 0, %s205
      %s225 = sphi 0, %s227
      %s228 = sphi 0, %s225
      %s229 = sphi 0, %s228
      %s245 = sphi 0, %s229
    $region4: #{tpu_custom_call.1} parent=1 // loop_header_branch
      %24 = sbr.rel (%p22) target = $region8
    $region5: #{tpu_custom_call.1} parent=1 // loop_body
      %s26 = ssub.s32 %s21, 1
      %s27 = ssub.s32 %s21, 2
      %s28 = sadd.s32 %s21, 1
      %s29 = ssub.s32 %s21, %s28
      %p30 = scmp.eq.s32.totalorder %s29, 0
      %s32 = sadd.s32 %s31, 1
      %s33 = scalar_select %p30, %s31, %s32
      %p36 = pneg %p30
      %p37 = scmp.eq.s32.totalorder %s21, 3
      %p38 = por %p36, %p37
      %p39 = scmp.ne.s32.totalorder %s31, %s34
      %p40 = scmp.eq.s32.totalorder %s21, 0
      %p41 = por %p39, %p40
      %p42 = scmp.ne.s32.totalorder %s31, %s34
      %p43 = scmp.eq.s32.totalorder %s26, 3
      %p44 = por %p42, %p43
      %p45 = scmp.ne.s32.totalorder %s34, %s35
      %p46 = scmp.eq.s32.totalorder %s26, 0
      %p47 = por %p45, %p46
      %p48 = scmp.ne.s32.totalorder %s34, %s35
      %p49 = scmp.eq.s32.totalorder %s27, 3
      %p50 = por %p48, %p49
      %p52 = scmp.ne.s32.totalorder %s35, %s51
      %p53 = scmp.eq.s32.totalorder %s27, 0
      %p54 = por %p52, %p53
      %s56 = sadd.s32 %s55, 1
      %p59 = scmp.eq.s32.totalorder %s21, 3
      %p60 = scmp.ne.s32.totalorder %s55, %s57
      %p61 = scmp.eq.s32.totalorder %s21, 0
      %p62 = por %p60, %p61
      %p63 = scmp.ne.s32.totalorder %s55, %s57
      %p64 = scmp.eq.s32.totalorder %s26, 3
      %p65 = por %p63, %p64
      %p66 = scmp.ne.s32.totalorder %s57, %s58
      %p67 = scmp.eq.s32.totalorder %s26, 0
      %p68 = por %p66, %p67
      %p69 = scmp.ne.s32.totalorder %s57, %s58
      %p70 = scmp.eq.s32.totalorder %s27, 3
      %p71 = por %p69, %p70
      %p73 = scmp.ne.s32.totalorder %s58, %s72
      %p74 = scmp.eq.s32.totalorder %s27, 0
      %p75 = por %p73, %p74
      %s77 = sadd.s32 %s76, 1
      %p80 = scmp.eq.s32.totalorder %s21, 3
      %p81 = scmp.ne.s32.totalorder %s76, %s78
      %p82 = scmp.eq.s32.totalorder %s21, 0
      %p83 = por %p81, %p82
      %p84 = scmp.ne.s32.totalorder %s76, %s78
      %p85 = scmp.eq.s32.totalorder %s26, 3
      %p86 = por %p84, %p85
      %p87 = scmp.ne.s32.totalorder %s78, %s79
      %p88 = scmp.eq.s32.totalorder %s26, 0
      %p89 = por %p87, %p88
      %p90 = scmp.ne.s32.totalorder %s78, %s79
      %p91 = scmp.eq.s32.totalorder %s27, 3
      %p92 = por %p90, %p91
      %p94 = scmp.ne.s32.totalorder %s79, %s93
      %p95 = scmp.eq.s32.totalorder %s27, 0
      %p96 = por %p94, %p95
      %s98 = sadd.s32 %s97, 1
      %p101 = scmp.eq.s32.totalorder %s21, 3
      %p102 = scmp.ne.s32.totalorder %s97, %s99
      %p103 = scmp.eq.s32.totalorder %s21, 0
      %p104 = por %p102, %p103
      %p105 = scmp.ne.s32.totalorder %s97, %s99
      %p106 = scmp.eq.s32.totalorder %s26, 3
      %p107 = por %p105, %p106
      %p108 = scmp.ne.s32.totalorder %s99, %s100
      %p109 = scmp.eq.s32.totalorder %s26, 0
      %p110 = por %p108, %p109
      %p111 = scmp.ne.s32.totalorder %s99, %s100
      %p112 = scmp.eq.s32.totalorder %s27, 3
      %p113 = por %p111, %p112
      %p115 = scmp.ne.s32.totalorder %s100, %s114
      %p116 = scmp.eq.s32.totalorder %s27, 0
      %p117 = por %p115, %p116
      %s119 = sadd.s32 %s118, 1
      %p122 = scmp.eq.s32.totalorder %s21, 3
      %p123 = scmp.ne.s32.totalorder %s118, %s120
      %p124 = scmp.eq.s32.totalorder %s21, 0
      %p125 = por %p123, %p124
      %p126 = scmp.ne.s32.totalorder %s118, %s120
      %p127 = scmp.eq.s32.totalorder %s26, 3
      %p128 = por %p126, %p127
      %p129 = scmp.ne.s32.totalorder %s120, %s121
      %p130 = scmp.eq.s32.totalorder %s26, 0
      %p131 = por %p129, %p130
      %p132 = scmp.ne.s32.totalorder %s120, %s121
      %p133 = scmp.eq.s32.totalorder %s27, 3
      %p134 = por %p132, %p133
      %p136 = scmp.ne.s32.totalorder %s121, %s135
      %p137 = scmp.eq.s32.totalorder %s27, 0
      %p138 = por %p136, %p137
      %s140 = sadd.s32 %s139, 1
      %p143 = scmp.eq.s32.totalorder %s21, 3
      %p144 = scmp.ne.s32.totalorder %s139, %s141
      %p145 = scmp.eq.s32.totalorder %s21, 0
      %p146 = por %p144, %p145
      %p147 = scmp.ne.s32.totalorder %s139, %s141
      %p148 = scmp.eq.s32.totalorder %s26, 3
      %p149 = por %p147, %p148
      %p150 = scmp.ne.s32.totalorder %s141, %s142
      %p151 = scmp.eq.s32.totalorder %s26, 0
      %p152 = por %p150, %p151
      %p153 = scmp.ne.s32.totalorder %s141, %s142
      %p154 = scmp.eq.s32.totalorder %s27, 3
      %p155 = por %p153, %p154
      %p157 = scmp.ne.s32.totalorder %s142, %s156
      %p158 = scmp.eq.s32.totalorder %s27, 0
      %p159 = por %p157, %p158
      %s161 = sadd.s32 %s160, 1
      %p164 = scmp.eq.s32.totalorder %s21, 3
      %p165 = scmp.ne.s32.totalorder %s160, %s162
      %p166 = scmp.eq.s32.totalorder %s21, 0
      %p167 = por %p165, %p166
      %p168 = scmp.ne.s32.totalorder %s160, %s162
      %p169 = scmp.eq.s32.totalorder %s26, 3
      %p170 = por %p168, %p169
      %p171 = scmp.ne.s32.totalorder %s162, %s163
      %p172 = scmp.eq.s32.totalorder %s26, 0
      %p173 = por %p171, %p172
      %p174 = scmp.ne.s32.totalorder %s162, %s163
      %p175 = scmp.eq.s32.totalorder %s27, 3
      %p176 = por %p174, %p175
      %p178 = scmp.ne.s32.totalorder %s163, %s177
      %p179 = scmp.eq.s32.totalorder %s27, 0
      %p180 = por %p178, %p179
      %s182 = sadd.s32 %s181, 1
      %p185 = scmp.eq.s32.totalorder %s21, 3
      %p186 = scmp.ne.s32.totalorder %s181, %s183
      %p187 = scmp.eq.s32.totalorder %s21, 0
      %p188 = por %p186, %p187
      %p189 = scmp.ne.s32.totalorder %s181, %s183
      %p190 = scmp.eq.s32.totalorder %s26, 3
      %p191 = por %p189, %p190
      %p192 = scmp.ne.s32.totalorder %s183, %s184
      %p193 = scmp.eq.s32.totalorder %s26, 0
      %p194 = por %p192, %p193
      %p195 = scmp.ne.s32.totalorder %s183, %s184
      %p196 = scmp.eq.s32.totalorder %s27, 3
      %p197 = por %p195, %p196
      %p199 = scmp.ne.s32.totalorder %s184, %s198
      %p200 = scmp.eq.s32.totalorder %s27, 0
      %p201 = por %p199, %p200
      %s203 = sadd.s32 %s202, 1
      %p206 = scmp.eq.s32.totalorder %s21, 3
      %p207 = scmp.ne.s32.totalorder %s202, %s204
      %p208 = scmp.eq.s32.totalorder %s21, 0
      %p209 = por %p207, %p208
      %p210 = scmp.ne.s32.totalorder %s202, %s204
      %p211 = scmp.eq.s32.totalorder %s26, 3
      %p212 = por %p210, %p211
      %p213 = scmp.ne.s32.totalorder %s204, %s205
      %p214 = scmp.eq.s32.totalorder %s26, 0
      %p215 = por %p213, %p214
      %p216 = scmp.ne.s32.totalorder %s204, %s205
      %p217 = scmp.eq.s32.totalorder %s27, 3
      %p218 = por %p216, %p217
      %p220 = scmp.ne.s32.totalorder %s205, %s219
      %p221 = scmp.eq.s32.totalorder %s27, 0
      %p222 = por %p220, %p221
      %s223 = ssub.s32 %s21, %s28
      %p224 = scmp.eq.s32.totalorder %s223, 0
      %s226 = sadd.s32 %s225, 1
      %s227 = scalar_select %p224, %s225, %s226
      %p230 = pneg %p224
      %p231 = scmp.eq.s32.totalorder %s21, 3
      %p232 = por %p230, %p231
      %p233 = scmp.ne.s32.totalorder %s225, %s228
      %p234 = scmp.eq.s32.totalorder %s21, 0
      %p235 = por %p233, %p234
      %p236 = scmp.ne.s32.totalorder %s225, %s228
      %p237 = scmp.eq.s32.totalorder %s26, 3
      %p238 = por %p236, %p237
      %p239 = scmp.ne.s32.totalorder %s228, %s229
      %p240 = scmp.eq.s32.totalorder %s26, 0
      %p241 = por %p239, %p240
      %p242 = scmp.ne.s32.totalorder %s228, %s229
      %p243 = scmp.eq.s32.totalorder %s27, 3
      %p244 = por %p242, %p243
      %p246 = scmp.ne.s32.totalorder %s229, %s245
      %p247 = scmp.eq.s32.totalorder %s27, 0
      %p248 = por %p246, %p247
      %p249 = scmp.le.s32.totalorder 1, %s21
      %p250 = scmp.lt.s32.totalorder %s21, 5
      %p251 = pnand %p249, %p250
      %p252 = pneg %p251
      // Predicated region
      $region9: #{tpu_custom_call.1} parent=5 // pred_check
        _
      $region10: #{tpu_custom_call.1} parent=5 // pred_check_branch
        %254 = sbr.rel (%p251) target = $region12
      $region11: #{tpu_custom_call.1} parent=5 // pred_region
        %s255 = ssub.s32 %s21, 1
        // Predicated region
        $region13: #{tpu_custom_call.1} parent=11 // pred_check
          %p256 = pneg %p68
        $region14: #{tpu_custom_call.1} parent=11 // pred_check_branch
          %258 = sbr.rel (%p256) target = $region16
        $region15: #{tpu_custom_call.1} parent=11 // pred_region
          _
        $region16: #{tpu_custom_call.1} parent=11 // pred_fallthru
          _
        // Predicated region
        $region17: #{tpu_custom_call.1} parent=11 // pred_check
          %p259 = pneg %p89
        $region18: #{tpu_custom_call.1} parent=11 // pred_check_branch
          %261 = sbr.rel (%p259) target = $region20
        $region19: #{tpu_custom_call.1} parent=11 // pred_region
          _
        $region20: #{tpu_custom_call.1} parent=11 // pred_fallthru
          _
        // Predicated region
        $region21: #{tpu_custom_call.1} parent=11 // pred_check
          %p262 = pneg %p110
        $region22: #{tpu_custom_call.1} parent=11 // pred_check_branch
          %264 = sbr.rel (%p262) target = $region24
        $region23: #{tpu_custom_call.1} parent=11 // pred_region
          _
        $region24: #{tpu_custom_call.1} parent=11 // pred_fallthru
          _
        // Predicated region
        $region25: #{tpu_custom_call.1} parent=11 // pred_check
          %p265 = pneg %p131
        $region26: #{tpu_custom_call.1} parent=11 // pred_check_branch
          %267 = sbr.rel (%p265) target = $region28
        $region27: #{tpu_custom_call.1} parent=11 // pred_region
          _
        $region28: #{tpu_custom_call.1} parent=11 // pred_fallthru
          _
        // Predicated region
        $region29: #{tpu_custom_call.1} parent=11 // pred_check
          %p268 = pneg %p152
        $region30: #{tpu_custom_call.1} parent=11 // pred_check_branch
          %270 = sbr.rel (%p268) target = $region32
        $region31: #{tpu_custom_call.1} parent=11 // pred_region
          _
        $region32: #{tpu_custom_call.1} parent=11 // pred_fallthru
          _
        // Predicated region
        $region33: #{tpu_custom_call.1} parent=11 // pred_check
          %p271 = pneg %p173
        $region34: #{tpu_custom_call.1} parent=11 // pred_check_branch
          %273 = sbr.rel (%p271) target = $region36
        $region35: #{tpu_custom_call.1} parent=11 // pred_region
          _
        $region36: #{tpu_custom_call.1} parent=11 // pred_fallthru
          _
        // Predicated region
        $region37: #{tpu_custom_call.1} parent=11 // pred_check
          %p274 = pneg %p194
        $region38: #{tpu_custom_call.1} parent=11 // pred_check_branch
          %276 = sbr.rel (%p274) target = $region40
        $region39: #{tpu_custom_call.1} parent=11 // pred_region
          _
        $region40: #{tpu_custom_call.1} parent=11 // pred_fallthru
          _
        // Predicated region
        $region41: #{tpu_custom_call.1} parent=11 // pred_check
          %p277 = pneg %p215
        $region42: #{tpu_custom_call.1} parent=11 // pred_check_branch
          %279 = sbr.rel (%p277) target = $region44
        $region43: #{tpu_custom_call.1} parent=11 // pred_region
          _
        $region44: #{tpu_custom_call.1} parent=11 // pred_fallthru
          _
      $region12: #{tpu_custom_call.1} parent=5 // pred_fallthru
        _
      %p280 = scmp.lt.s32.totalorder %s21, 4
      // Predicated region
      $region45: #{tpu_custom_call.1} parent=5 // pred_check
        %p281 = pneg %p280
      $region46: #{tpu_custom_call.1} parent=5 // pred_check_branch
        %283 = sbr.rel (%p281) target = $region48
      $region47: #{tpu_custom_call.1} parent=5 // pred_region
        // Predicated region
        $region49: #{tpu_custom_call.1} parent=47 // pred_check
          %p284 = pneg %p41
        $region50: #{tpu_custom_call.1} parent=47 // pred_check_branch
          %286 = sbr.rel (%p284) target = $region52
        $region51: #{tpu_custom_call.1} parent=47 // pred_region
          %s287 = sand.u32 %s31, 1
          %s288 = scalar_lea.sflag [#allocation3], %s287
          %s289 = sand.u32 %s31, 1
          %s290 = smul.addr %s289, 32
          %s291 = scalar_lea.vmem [#allocation2], %s290
          %s293 = ssub.s32 512, 512
          %294 = vsyncadd %s288, %s293
          %s295 = smul.addr %s21, 4
          %s296 = smul.addr %s295, 128
          %s297 = scalar_lea.hbm %s0, %s296
          %s298 = sshll.u32 %s291, 4
          %s299 = int_to_ptr.vmem [resolvable:$true] %s298
          %304 = dma.hbm_to_vmem [thread:$0]  %s297, 512, %s299, %s288, 256, 256, 16
        $region52: #{tpu_custom_call.1} parent=47 // pred_fallthru
          _
      $region48: #{tpu_custom_call.1} parent=5 // pred_fallthru
        _
      %p305 = scmp.le.s32.totalorder 1, %s21
      %p306 = scmp.lt.s32.totalorder %s21, 5
      %p307 = pnand %p305, %p306
      %p308 = pneg %p307
      // Predicated region
      $region53: #{tpu_custom_call.1} parent=5 // pred_check
        _
      $region54: #{tpu_custom_call.1} parent=5 // pred_check_branch
        %310 = sbr.rel (%p307) target = $region56
      $region55: #{tpu_custom_call.1} parent=5 // pred_region
        %s311 = ssub.s32 %s21, 1
        %s312 = sand.u32 %s34, 1
        %s313 = scalar_lea.sflag [#allocation3], %s312
        %s314 = sand.u32 %s34, 1
        %s315 = smul.addr %s314, 32
        %s316 = scalar_lea.vmem [#allocation2], %s315
        // Predicated region
        $region57: #{tpu_custom_call.1} parent=55 // pred_check
          %p317 = pneg %p47
        $region58: #{tpu_custom_call.1} parent=55 // pred_check_branch
          %319 = sbr.rel (%p317) target = $region60
        $region59: #{tpu_custom_call.1} parent=55 // pred_region
          %320 = dma.done %s313, 512
        $region60: #{tpu_custom_call.1} parent=55 // pred_fallthru
          _
        %s321 = sand.u32 %s34, 1
        %s322 = scalar_lea.sflag [#allocation3], %s321
        %s323 = sand.u32 %s34, 1
        %s324 = smul.addr %s323, 32
        %s325 = scalar_lea.vmem [#allocation2], %s324
        %p326 = pneg %p47
        %p327 = pneg %p44
        %p328 = pneg %p68
        %p329 = pneg %p65
        %p330 = pneg %p89
        %p331 = pneg %p86
        %p332 = pneg %p110
        %p333 = pneg %p107
        %p334 = pneg %p131
        %p335 = pneg %p128
        %p336 = pneg %p152
        %p337 = pneg %p149
        %p338 = pneg %p173
        %p339 = pneg %p170
        %p340 = pneg %p194
        %p341 = pneg %p191
        %p342 = pneg %p215
        %p343 = pneg %p212
        %p344 = pneg %p241
        %p345 = pneg %p238
        %s346 = sand.u32 %s228, 1
        %s347 = scalar_lea.sflag [#allocation4], %s346
        %s348 = sand.u32 %s228, 1
        %s349 = smul.addr %s348, 32
        %s350 = scalar_lea.vmem [#allocation5], %s349
        %v351 = vld [vmem:[%s316] sm:$0xff]
        %v352 = vld [vmem:[%s316 + $0x8] sm:$0xff]
        %v353 = vld [vmem:[%s316 + $0x10] sm:$0xff]
        %v354 = vld [vmem:[%s316 + $0x18] sm:$0xff]
        %v355 = vlaneseq
        %v356 = vand.u32 %v355, 127
        %v357 = vadd.s32 %v356, 128
        %vm358 = vcmp.ne.s32.totalorder %v356, 0
        %vm359 = vcmp.ne.s32.totalorder %v357, 0
        %v360 = vsel %vm358, 1, 0
        %v361 = vsel %vm359, 1, 0
        %v362 = vcvt.s32.f32 %v360
        %v363 = vcvt.s32.f32 %v361
        %vm364 = vcmp.ne.s32.totalorder %v356, 255
        %vm365 = vcmp.ne.s32.totalorder %v357, 255
        %v366 = vsel %vm364, 1, 0
        %v367 = vsel %vm365, 1, 0
        %v368 = vcvt.s32.f32 %v366
        %v369 = vcvt.s32.f32 %v367
        %370 = vrot.lane.b32.xlu0 %v351, 1
        %v371 = vpop.permute.xlu0 %370
        %372 = vrot.lane.b32.xlu0 %v353, 1
        %v373 = vpop.permute.xlu0 %372
        %374 = vrot.lane.b32.xlu0 %v352, 1
        %v375 = vpop.permute.xlu0 %374
        %376 = vrot.lane.b32.xlu0 %v354, 1
        %v377 = vpop.permute.xlu0 %376
        %vm378 = vcmp.lt.s32.totalorder %v356, 1
        %v379 = vsel %vm378, %v371, %v375
        %v380 = vsel %vm378, %v373, %v377
        %v381 = vsel %vm378, %v375, %v371
        %v382 = vsel %vm378, %v377, %v373
        %v383 = vmul.f32 %v381, %v362
        %v384 = vmul.f32 %v379, %v363
        %v385 = vmul.f32 %v382, %v362
        %v386 = vmul.f32 %v380, %v363
        %387 = vrot.lane.b32.xlu0 %v351, 127
        %v388 = vpop.permute.xlu0 %387
        %389 = vrot.lane.b32.xlu0 %v353, 127
        %v390 = vpop.permute.xlu0 %389
        %391 = vrot.lane.b32.xlu0 %v352, 127
        %v392 = vpop.permute.xlu0 %391
        %393 = vrot.lane.b32.xlu0 %v354, 127
        %v394 = vpop.permute.xlu0 %393
        %vm395 = vcmp.lt.s32.totalorder %v356, 127
        %v396 = vsel %vm395, %v388, %v392
        %v397 = vsel %vm395, %v390, %v394
        %v398 = vsel %vm395, %v392, %v388
        %v399 = vsel %vm395, %v394, %v390
        %v400 = vmul.f32 %v396, %v368
        %v401 = vmul.f32 %v398, %v369
        %v402 = vmul.f32 %v397, %v368
        %v403 = vmul.f32 %v399, %v369
        %v404 = vld [vmem:[%s1] sm:$0xff]
        %v405 = vld [vmem:[%s1 + $0x8] sm:$0xff]
        %vm406 = vcmask 392192
        %v408 = vsel %vm406, %v404, 0
        %v411 = vsel %vm406, %v405, 0
        %413 = vmatprep.subr.mxu0 %v384
        %414 = vmatpush1.msra.mxu0 %v383
        %415 = vmatprep.subr.mxu0 %v386
        %416 = vmatpush1.msra.mxu0 %v385
        %417 = vmatprep.subr.mxu0 %v352
        %418 = vmatpush1.msra.mxu0 %v351
        %419 = vmatprep.subr.mxu0 %v354
        %420 = vmatpush1.msra.mxu0 %v353
        %421 = vmatprep.subr.mxu0 %v401
        %422 = vmatpush1.msra.mxu0 %v400
        %423 = vmatprep.subr.mxu0 %v403
        %424 = vmatpush1.msra.mxu0 %v402
        %425 = vmatprep.subr.mxu0 0.0
        %426 = vmatpush1.msra.mxu0 0.0
        %427 = vmatprep.subr.mxu0 0.0
        %428 = vmatpush1.msra.mxu0 0.0
        %429 = vmatprep.subr.mxu0 0.0
        %430 = vmatpush1.msra.mxu0 0.0
        %431 = vmatprep.subr.mxu0 0.0
        %432 = vmatpush1.msra.mxu0 0.0
        %433 = vmatprep.subr.mxu0 0.0
        %434 = vmatpush1.msra.mxu0 0.0
        %435 = vmatprep.subr.mxu0 0.0
        %436 = vmatpush1.msra.mxu0 0.0
        %437 = vmatprep.subr.mxu0 0.0
        %438 = vmatpush1.msra.mxu0 0.0
        %439 = vmatprep.subr.mxu0 0.0
        %440 = vmatpush1.msra.mxu0 0.0
        %441 = vmatprep.subr.mxu0 0.0
        %442 = vmatpush1.msra.mxu0 0.0
        %443 = vmatprep.subr.mxu0 0.0
        %444 = vmatpush1.msra.mxu0 0.0
        %445 = vmatprep.subr.mxu0 0.0
        %446 = vmatpush1.msra.mxu0 0.0
        %447 = vmatprep.subr.mxu0 0.0
        %448 = vmatpush1.msra.mxu0 0.0
        %449 = vmatprep.subr.mxu0 0.0
        %450 = vmatpush1.msra.mxu0 0.0
        %451 = vmatprep.subr.mxu0 0.0
        %452 = vmatpush1.msra.mxu0 0.0
        %453 = vmatprep.subr.mxu0 0.0
        %454 = vmatpush1.msra.mxu0 0.0
        %455 = vmatprep.subr.mxu0 0.0
        %456 = vmatpush1.msra.mxu0 0.0
        %457 = vmatprep.subr.mxu0 0.0
        %458 = vmatpush1.msra.mxu0 0.0
        %459 = vmatprep.subr.mxu0 0.0
        %460 = vmatpush1.msra.mxu0 0.0
        %461 = vmatprep.subr.mxu0 0.0
        %462 = vmatpush1.msra.mxu0 0.0
        %463 = vmatprep.subr.mxu0 0.0
        %464 = vmatpush1.msra.mxu0 0.0
        %465 = vmatprep.subr.mxu0 0.0
        %466 = vmatpush1.msra.mxu0 0.0
        %467 = vmatprep.subr.mxu0 0.0
        %468 = vmatpush1.msra.mxu0 0.0
        %469 = vmatprep.subr.mxu0 0.0
        %470 = vmatpush1.msra.mxu0 0.0
        %471 = vmatprep.subr.mxu0 0.0
        %472 = vmatpush1.msra.mxu0 0.0
        %473 = vmatprep.subr.mxu0 0.0
        %474 = vmatpush1.msra.mxu0 0.0
        %475 = vmatprep.subr.mxu0 0.0
        %476 = vmatpush1.msra.mxu0 0.0
        %477 = vmatprep.mubr.f32.mxu0 0.0
        %478 = vmatmul.mubr.f32.gmra.mrb[0].mxu0 %v408
        %v479 = vpop.f32.mrb[0].mxu0
        %v480 = vadd.f32 0.0, %v479
        %v481 = vpop.f32.mrb[0].mxu0
        %v482 = vadd.f32 0.0, %v481
        %483 = vmatprep.mubr.f32.mxu0 0.0
        %484 = vmatmul.mubr.f32.gmra.mrb[0].mxu0 %v411
        %v485 = vpop.f32.mrb[0].mxu0
        %v486 = vadd.f32 0.0, %v485
        %v487 = vpop.f32.mrb[0].mxu0
        %v488 = vadd.f32 0.0, %v487
        %489 = vdwg.mxu0
        %v490 = vadd.f32 %v480, %v482
        %491 = vadd.xlane.f32.xlu0 %v490
        %v492 = vpop.xlane.xlu0 %491
        %v493 = vrot.slane %v492, 4
        %v494 = vadd.f32 %v492, %v493
        %v495 = vrot.slane %v494, 2
        %v496 = vadd.f32 %v494, %v495
        %v497 = vrot.slane %v496, 1
        %v498 = vadd.f32 %v496, %v497
        %v499 = vmul.f32 %v498, 0.00048828125
        %v500 = vsub.f32 %v480, %v499
        %v501 = vsub.f32 %v482, %v499
        %v502 = vmul.f32 %v500, %v500
        %v503 = vmul.f32 %v501, %v501
        %v504 = vadd.f32 %v502, %v503
        %505 = vadd.xlane.f32.xlu0 %v504
        %v506 = vpop.xlane.xlu0 %505
        %v507 = vrot.slane %v506, 4
        %v508 = vadd.f32 %v506, %v507
        %v509 = vrot.slane %v508, 2
        %v510 = vadd.f32 %v508, %v509
        %v511 = vrot.slane %v510, 1
        %v512 = vadd.f32 %v510, %v511
        %v513 = vmul.f32 %v512, 0.00048828125
        %v514 = vadd.f32 %v513, 1e-05
        %v515 = vrsqrt.pop %v514
        %v516 = vmul.f32 %v500, %v515
        %v517 = vmul.f32 %v501, %v515
        %v518 = vadd.f32 %v486, %v488
        %519 = vadd.xlane.f32.xlu0 %v518
        %v520 = vpop.xlane.xlu0 %519
        %v521 = vrot.slane %v520, 4
        %v522 = vadd.f32 %v520, %v521
        %v523 = vrot.slane %v522, 2
        %v524 = vadd.f32 %v522, %v523
        %v525 = vrot.slane %v524, 1
        %v526 = vadd.f32 %v524, %v525
        %v527 = vmul.f32 %v526, 0.00048828125
        %v528 = vsub.f32 %v486, %v527
        %v529 = vsub.f32 %v488, %v527
        %v530 = vmul.f32 %v528, %v528
        %v531 = vmul.f32 %v529, %v529
        %v532 = vadd.f32 %v530, %v531
        %533 = vadd.xlane.f32.xlu0 %v532
        %v534 = vpop.xlane.xlu0 %533
        %v535 = vrot.slane %v534, 4
        %v536 = vadd.f32 %v534, %v535
        %v537 = vrot.slane %v536, 2
        %v538 = vadd.f32 %v536, %v537
        %v539 = vrot.slane %v538, 1
        %v540 = vadd.f32 %v538, %v539
        %v541 = vmul.f32 %v540, 0.00048828125
        %v542 = vadd.f32 %v541, 1e-05
        %v543 = vrsqrt.pop %v542
        %v544 = vmul.f32 %v528, %v543
        %v545 = vmul.f32 %v529, %v543
        %v546 = vld [vmem:[%s2] sm:$0xff]
        %v547 = vld [vmem:[%s2 + $0x8] sm:$0xff]
        %549 = vset.pattern.permute.xlu0 0
        %550 = vperm.xlu0 %549, %v546
        %v551 = vpop.permute.xlu0 %550
        %554 = vset.pattern.permute.xlu0 0
        %555 = vperm.xlu0 %554, %v547
        %v556 = vpop.permute.xlu0 %555
        %v558 = vmul.f32 %v516, %v551
        %v559 = vmul.f32 %v517, %v551
        %v560 = vmul.f32 %v544, %v556
        %v561 = vmul.f32 %v545, %v556
        %v562 = vld [vmem:[%s3] sm:$0xff]
        %v563 = vld [vmem:[%s3 + $0x8] sm:$0xff]
        %565 = vset.pattern.permute.xlu0 0
        %566 = vperm.xlu0 %565, %v562
        %v567 = vpop.permute.xlu0 %566
        %570 = vset.pattern.permute.xlu0 0
        %571 = vperm.xlu0 %570, %v563
        %v572 = vpop.permute.xlu0 %571
        %v574 = vadd.f32 %v558, %v567
        %v575 = vadd.f32 %v559, %v567
        %v576 = vadd.f32 %v560, %v572
        %v577 = vadd.f32 %v561, %v572
        %v578 = vmul.f32 %v574, 0.5
        %v579 = vmul.f32 %v575, 0.5
        %v580 = vmul.f32 %v576, 0.5
        %v581 = vmul.f32 %v577, 0.5
        %v582 = vmul.f32 %v574, 0.70710677
        %v583 = vmul.f32 %v575, 0.70710677
        %v584 = vmul.f32 %v576, 0.70710677
        %v585 = vmul.f32 %v577, 0.70710677
        %vm586 = vcmp.ge.f32.partialorder %v582, 0.0
        %vm587 = vcmp.ge.f32.partialorder %v583, 0.0
        %vm588 = vcmp.ge.f32.partialorder %v584, 0.0
        %vm589 = vcmp.ge.f32.partialorder %v585, 0.0
        %v590 = vsel %vm586, 1.0, -1.0
        %v591 = vsel %vm587, 1.0, -1.0
        %v592 = vsel %vm588, 1.0, -1.0
        %v593 = vsel %vm589, 1.0, -1.0
        %v594 = vand.u32 2147483647, %v582
        %v595 = vand.u32 2147483647, %v583
        %v596 = vand.u32 2147483647, %v584
        %v597 = vand.u32 2147483647, %v585
        %v598 = vmul.f32 %v594, 0.3275911
        %v599 = vmul.f32 %v595, 0.3275911
        %v600 = vmul.f32 %v596, 0.3275911
        %v601 = vmul.f32 %v597, 0.3275911
        %v602 = vadd.f32 %v598, 1.0
        %v603 = vadd.f32 %v599, 1.0
        %v604 = vadd.f32 %v600, 1.0
        %v605 = vadd.f32 %v601, 1.0
        %v606 = vrcp.pop %v602
        %v607 = vmul.f32 1.0, %v606
        %v608 = vrcp.pop %v603
        %v609 = vmul.f32 1.0, %v608
        %v610 = vrcp.pop %v604
        %v611 = vmul.f32 1.0, %v610
        %v612 = vrcp.pop %v605
        %v613 = vmul.f32 1.0, %v612
        %v614 = vmul.f32 %v607, 1.0614054
        %v615 = vmul.f32 %v609, 1.0614054
        %v616 = vmul.f32 %v611, 1.0614054
        %v617 = vmul.f32 %v613, 1.0614054
        %v618 = vadd.f32 %v614, -1.4531521
        %v619 = vadd.f32 %v615, -1.4531521
        %v620 = vadd.f32 %v616, -1.4531521
        %v621 = vadd.f32 %v617, -1.4531521
        %v622 = vmul.f32 %v618, %v607
        %v623 = vmul.f32 %v619, %v609
        %v624 = vmul.f32 %v620, %v611
        %v625 = vmul.f32 %v621, %v613
        %v626 = vadd.f32 %v622, 1.4214138
        %v627 = vadd.f32 %v623, 1.4214138
        %v628 = vadd.f32 %v624, 1.4214138
        %v629 = vadd.f32 %v625, 1.4214138
        %v630 = vmul.f32 %v626, %v607
        %v631 = vmul.f32 %v627, %v609
        %v632 = vmul.f32 %v628, %v611
        %v633 = vmul.f32 %v629, %v613
        %v634 = vadd.f32 %v630, -0.28449672
        %v635 = vadd.f32 %v631, -0.28449672
        %v636 = vadd.f32 %v632, -0.28449672
        %v637 = vadd.f32 %v633, -0.28449672
        %v638 = vmul.f32 %v634, %v607
        %v639 = vmul.f32 %v635, %v609
        %v640 = vmul.f32 %v636, %v611
        %v641 = vmul.f32 %v637, %v613
        %v642 = vadd.f32 %v638, 0.2548296
        %v643 = vadd.f32 %v639, 0.2548296
        %v644 = vadd.f32 %v640, 0.2548296
        %v645 = vadd.f32 %v641, 0.2548296
        %v646 = vmul.f32 %v642, %v607
        %v647 = vmul.f32 %v643, %v609
        %v648 = vmul.f32 %v644, %v611
        %v649 = vmul.f32 %v645, %v613
        %v650 = vsub.f32 0.0, %v594
        %v651 = vsub.f32 0.0, %v595
        %v652 = vsub.f32 0.0, %v596
        %v653 = vsub.f32 0.0, %v597
        %v654 = vmul.f32 %v650, %v594
        %v655 = vmul.f32 %v651, %v595
        %v656 = vmul.f32 %v652, %v596
        %v657 = vmul.f32 %v653, %v597
        %v658 = vmul.f32 %v654, 1.442695
        %v659 = vpow.pop %v658
        %v660 = vmul.f32 %v655, 1.442695
        %v661 = vpow.pop %v660
        %v662 = vmul.f32 %v656, 1.442695
        %v663 = vpow.pop %v662
        %v664 = vmul.f32 %v657, 1.442695
        %v665 = vpow.pop %v664
        %v666 = vmul.f32 %v646, %v659
        %v667 = vmul.f32 %v647, %v661
        %v668 = vmul.f32 %v648, %v663
        %v669 = vmul.f32 %v649, %v665
        %v670 = vsub.f32 1.0, %v666
        %v671 = vsub.f32 1.0, %v667
        %v672 = vsub.f32 1.0, %v668
        %v673 = vsub.f32 1.0, %v669
        %v674 = vmul.f32 %v590, %v670
        %v675 = vmul.f32 %v591, %v671
        %v676 = vmul.f32 %v592, %v672
        %v677 = vmul.f32 %v593, %v673
        %v678 = vadd.f32 %v674, 1.0
        %v679 = vadd.f32 %v675, 1.0
        %v680 = vadd.f32 %v676, 1.0
        %v681 = vadd.f32 %v677, 1.0
        %v682 = vmul.f32 %v578, %v678
        %v683 = vmul.f32 %v579, %v679
        %v684 = vmul.f32 %v580, %v680
        %v685 = vmul.f32 %v581, %v681
        %686 = vrot.lane.b32.xlu0 %v682, 1
        %v687 = vpop.permute.xlu0 %686
        %688 = vrot.lane.b32.xlu0 %v684, 1
        %v689 = vpop.permute.xlu0 %688
        %690 = vrot.lane.b32.xlu0 %v683, 1
        %v691 = vpop.permute.xlu0 %690
        %692 = vrot.lane.b32.xlu0 %v685, 1
        %v693 = vpop.permute.xlu0 %692
        %v694 = vsel %vm378, %v687, %v691
        %v695 = vsel %vm378, %v689, %v693
        %v696 = vsel %vm378, %v691, %v687
        %v697 = vsel %vm378, %v693, %v689
        %v698 = vmul.f32 %v696, %v362
        %v699 = vmul.f32 %v694, %v363
        %v700 = vmul.f32 %v697, %v362
        %v701 = vmul.f32 %v695, %v363
        %702 = vrot.lane.b32.xlu0 %v682, 127
        %v703 = vpop.permute.xlu0 %702
        %704 = vrot.lane.b32.xlu0 %v684, 127
        %v705 = vpop.permute.xlu0 %704
        %706 = vrot.lane.b32.xlu0 %v683, 127
        %v707 = vpop.permute.xlu0 %706
        %708 = vrot.lane.b32.xlu0 %v685, 127
        %v709 = vpop.permute.xlu0 %708
        %v710 = vsel %vm395, %v703, %v707
        %v711 = vsel %vm395, %v705, %v709
        %v712 = vsel %vm395, %v707, %v703
        %v713 = vsel %vm395, %v709, %v705
        %v714 = vmul.f32 %v710, %v368
        %v715 = vmul.f32 %v712, %v369
        %v716 = vmul.f32 %v711, %v368
        %v717 = vmul.f32 %v713, %v369
        %v718 = vld [vmem:[%s4] sm:$0xff]
        %v719 = vld [vmem:[%s4 + $0x8] sm:$0xff]
        %v720 = vld [vmem:[%s4 + $0x10] sm:$0xff]
        %v721 = vld [vmem:[%s4 + $0x18] sm:$0xff]
        %v723 = vsel %vm406, %v718, 0
        %v726 = vsel %vm406, %v719, 0
        %v729 = vsel %vm406, %v720, 0
        %v732 = vsel %vm406, %v721, 0
        %734 = vmatprep.subr.mxu0 %v699
        %735 = vmatpush1.msra.mxu0 %v698
        %736 = vmatprep.subr.mxu0 %v701
        %737 = vmatpush1.msra.mxu0 %v700
        %738 = vmatprep.subr.mxu0 %v683
        %739 = vmatpush1.msra.mxu0 %v682
        %740 = vmatprep.subr.mxu0 %v685
        %741 = vmatpush1.msra.mxu0 %v684
        %742 = vmatprep.subr.mxu0 %v715
        %743 = vmatpush1.msra.mxu0 %v714
        %744 = vmatprep.subr.mxu0 %v717
        %745 = vmatpush1.msra.mxu0 %v716
        %746 = vmatprep.subr.mxu0 0.0
        %747 = vmatpush1.msra.mxu0 0.0
        %748 = vmatprep.subr.mxu0 0.0
        %749 = vmatpush1.msra.mxu0 0.0
        %750 = vmatprep.subr.mxu0 0.0
        %751 = vmatpush1.msra.mxu0 0.0
        %752 = vmatprep.subr.mxu0 0.0
        %753 = vmatpush1.msra.mxu0 0.0
        %754 = vmatprep.subr.mxu0 0.0
        %755 = vmatpush1.msra.mxu0 0.0
        %756 = vmatprep.subr.mxu0 0.0
        %757 = vmatpush1.msra.mxu0 0.0
        %758 = vmatprep.subr.mxu0 0.0
        %759 = vmatpush1.msra.mxu0 0.0
        %760 = vmatprep.subr.mxu0 0.0
        %761 = vmatpush1.msra.mxu0 0.0
        %762 = vmatprep.subr.mxu0 0.0
        %763 = vmatpush1.msra.mxu0 0.0
        %764 = vmatprep.subr.mxu0 0.0
        %765 = vmatpush1.msra.mxu0 0.0
        %766 = vmatprep.subr.mxu0 0.0
        %767 = vmatpush1.msra.mxu0 0.0
        %768 = vmatprep.subr.mxu0 0.0
        %769 = vmatpush1.msra.mxu0 0.0
        %770 = vmatprep.subr.mxu0 0.0
        %771 = vmatpush1.msra.mxu0 0.0
        %772 = vmatprep.subr.mxu0 0.0
        %773 = vmatpush1.msra.mxu0 0.0
        %774 = vmatprep.subr.mxu0 0.0
        %775 = vmatpush1.msra.mxu0 0.0
        %776 = vmatprep.subr.mxu0 0.0
        %777 = vmatpush1.msra.mxu0 0.0
        %778 = vmatprep.subr.mxu0 0.0
        %779 = vmatpush1.msra.mxu0 0.0
        %780 = vmatprep.subr.mxu0 0.0
        %781 = vmatpush1.msra.mxu0 0.0
        %782 = vmatprep.subr.mxu0 0.0
        %783 = vmatpush1.msra.mxu0 0.0
        %784 = vmatprep.subr.mxu0 0.0
        %785 = vmatpush1.msra.mxu0 0.0
        %786 = vmatprep.subr.mxu0 0.0
        %787 = vmatpush1.msra.mxu0 0.0
        %788 = vmatprep.subr.mxu0 0.0
        %789 = vmatpush1.msra.mxu0 0.0
        %790 = vmatprep.subr.mxu0 0.0
        %791 = vmatpush1.msra.mxu0 0.0
        %792 = vmatprep.subr.mxu0 0.0
        %793 = vmatpush1.msra.mxu0 0.0
        %794 = vmatprep.subr.mxu0 0.0
        %795 = vmatpush1.msra.mxu0 0.0
        %796 = vmatprep.subr.mxu0 0.0
        %797 = vmatpush1.msra.mxu0 0.0
        %798 = vmatprep.mubr.f32.mxu0 0.0
        %799 = vmatmul.mubr.f32.gmra.mrb[0].mxu0 %v723
        %v800 = vpop.f32.mrb[0].mxu0
        %v801 = vadd.f32 0.0, %v800
        %v802 = vpop.f32.mrb[0].mxu0
        %v803 = vadd.f32 0.0, %v802
        %804 = vmatprep.mubr.f32.mxu0 0.0
        %805 = vmatmul.mubr.f32.gmra.mrb[0].mxu0 %v726
        %v806 = vpop.f32.mrb[0].mxu0
        %v807 = vadd.f32 0.0, %v806
        %v808 = vpop.f32.mrb[0].mxu0
        %v809 = vadd.f32 0.0, %v808
        %810 = vmatprep.mubr.f32.mxu0 0.0
        %811 = vmatmul.mubr.f32.gmra.mrb[0].mxu0 %v729
        %v812 = vpop.f32.mrb[0].mxu0
        %v813 = vadd.f32 0.0, %v812
        %v814 = vpop.f32.mrb[0].mxu0
        %v815 = vadd.f32 0.0, %v814
        %816 = vmatprep.mubr.f32.mxu0 0.0
        %817 = vmatmul.mubr.f32.gmra.mrb[0].mxu0 %v732
        %v818 = vpop.f32.mrb[0].mxu0
        %v819 = vadd.f32 0.0, %v818
        %v820 = vpop.f32.mrb[0].mxu0
        %v821 = vadd.f32 0.0, %v820
        %822 = vdwg.mxu0
        %v823 = vadd.f32 %v801, %v803
        %824 = vadd.xlane.f32.xlu0 %v823
        %v825 = vpop.xlane.xlu0 %824
        %v826 = vadd.f32 %v807, %v809
        %827 = vadd.xlane.f32.xlu0 %v826
        %v828 = vpop.xlane.xlu0 %827
        %v829 = vadd.f32 %v825, %v828
        %v830 = vrot.slane %v829, 4
        %v831 = vadd.f32 %v829, %v830
        %v832 = vrot.slane %v831, 2
        %v833 = vadd.f32 %v831, %v832
        %v834 = vrot.slane %v833, 1
        %v835 = vadd.f32 %v833, %v834
        %v836 = vmul.f32 %v835, 0.00024414063
        %v837 = vsub.f32 %v801, %v836
        %v838 = vsub.f32 %v803, %v836
        %v839 = vsub.f32 %v807, %v836
        %v840 = vsub.f32 %v809, %v836
        %v841 = vmul.f32 %v837, %v837
        %v842 = vmul.f32 %v838, %v838
        %v843 = vmul.f32 %v839, %v839
        %v844 = vmul.f32 %v840, %v840
        %v845 = vadd.f32 %v841, %v842
        %846 = vadd.xlane.f32.xlu0 %v845
        %v847 = vpop.xlane.xlu0 %846
        %v848 = vadd.f32 %v843, %v844
        %849 = vadd.xlane.f32.xlu0 %v848
        %v850 = vpop.xlane.xlu0 %849
        %v851 = vadd.f32 %v847, %v850
        %v852 = vrot.slane %v851, 4
        %v853 = vadd.f32 %v851, %v852
        %v854 = vrot.slane %v853, 2
        %v855 = vadd.f32 %v853, %v854
        %v856 = vrot.slane %v855, 1
        %v857 = vadd.f32 %v855, %v856
        %v858 = vmul.f32 %v857, 0.00024414063
        %v859 = vadd.f32 %v858, 1e-05
        %v860 = vrsqrt.pop %v859
        %v861 = vmul.f32 %v837, %v860
        %v862 = vmul.f32 %v838, %v860
        %v863 = vmul.f32 %v839, %v860
        %v864 = vmul.f32 %v840, %v860
        %v865 = vadd.f32 %v813, %v815
        %866 = vadd.xlane.f32.xlu0 %v865
        %v867 = vpop.xlane.xlu0 %866
        %v868 = vadd.f32 %v819, %v821
        %869 = vadd.xlane.f32.xlu0 %v868
        %v870 = vpop.xlane.xlu0 %869
        %v871 = vadd.f32 %v867, %v870
        %v872 = vrot.slane %v871, 4
        %v873 = vadd.f32 %v871, %v872
        %v874 = vrot.slane %v873, 2
        %v875 = vadd.f32 %v873, %v874
        %v876 = vrot.slane %v875, 1
        %v877 = vadd.f32 %v875, %v876
        %v878 = vmul.f32 %v877, 0.00024414063
        %v879 = vsub.f32 %v813, %v878
        %v880 = vsub.f32 %v815, %v878
        %v881 = vsub.f32 %v819, %v878
        %v882 = vsub.f32 %v821, %v878
        %v883 = vmul.f32 %v879, %v879
        %v884 = vmul.f32 %v880, %v880
        %v885 = vmul.f32 %v881, %v881
        %v886 = vmul.f32 %v882, %v882
        %v887 = vadd.f32 %v883, %v884
        %888 = vadd.xlane.f32.xlu0 %v887
        %v889 = vpop.xlane.xlu0 %888
        %v890 = vadd.f32 %v885, %v886
        %891 = vadd.xlane.f32.xlu0 %v890
        %v892 = vpop.xlane.xlu0 %891
        %v893 = vadd.f32 %v889, %v892
        %v894 = vrot.slane %v893, 4
        %v895 = vadd.f32 %v893, %v894
        %v896 = vrot.slane %v895, 2
        %v897 = vadd.f32 %v895, %v896
        %v898 = vrot.slane %v897, 1
        %v899 = vadd.f32 %v897, %v898
        %v900 = vmul.f32 %v899, 0.00024414063
        %v901 = vadd.f32 %v900, 1e-05
        %v902 = vrsqrt.pop %v901
        %v903 = vmul.f32 %v879, %v902
        %v904 = vmul.f32 %v880, %v902
        %v905 = vmul.f32 %v881, %v902
        %v906 = vmul.f32 %v882, %v902
        %v907 = vld [vmem:[%s5] sm:$0xff]
        %v908 = vld [vmem:[%s5 + $0x8] sm:$0xff]
        %v909 = vld [vmem:[%s5 + $0x10] sm:$0xff]
        %v910 = vld [vmem:[%s5 + $0x18] sm:$0xff]
        %912 = vset.pattern.permute.xlu0 0
        %913 = vperm.xlu0 %912, %v907
        %v914 = vpop.permute.xlu0 %913
        %917 = vset.pattern.permute.xlu0 0
        %918 = vperm.xlu0 %917, %v908
        %v919 = vpop.permute.xlu0 %918
        %922 = vset.pattern.permute.xlu0 0
        %923 = vperm.xlu0 %922, %v909
        %v924 = vpop.permute.xlu0 %923
        %927 = vset.pattern.permute.xlu0 0
        %928 = vperm.xlu0 %927, %v910
        %v929 = vpop.permute.xlu0 %928
        %v931 = vmul.f32 %v861, %v914
        %v932 = vmul.f32 %v862, %v914
        %v933 = vmul.f32 %v863, %v919
        %v934 = vmul.f32 %v864, %v919
        %v935 = vmul.f32 %v903, %v924
        %v936 = vmul.f32 %v904, %v924
        %v937 = vmul.f32 %v905, %v929
        %v938 = vmul.f32 %v906, %v929
        %v939 = vld [vmem:[%s6] sm:$0xff]
        %v940 = vld [vmem:[%s6 + $0x8] sm:$0xff]
        %v941 = vld [vmem:[%s6 + $0x10] sm:$0xff]
        %v942 = vld [vmem:[%s6 + $0x18] sm:$0xff]
        %944 = vset.pattern.permute.xlu0 0
        %945 = vperm.xlu0 %944, %v939
        %v946 = vpop.permute.xlu0 %945
        %949 = vset.pattern.permute.xlu0 0
        %950 = vperm.xlu0 %949, %v940
        %v951 = vpop.permute.xlu0 %950
        %954 = vset.pattern.permute.xlu0 0
        %955 = vperm.xlu0 %954, %v941
        %v956 = vpop.permute.xlu0 %955
        %959 = vset.pattern.permute.xlu0 0
        %960 = vperm.xlu0 %959, %v942
        %v961 = vpop.permute.xlu0 %960
        %v963 = vadd.f32 %v931, %v946
        %v964 = vadd.f32 %v932, %v946
        %v965 = vadd.f32 %v933, %v951
        %v966 = vadd.f32 %v934, %v951
        %v967 = vadd.f32 %v935, %v956
        %v968 = vadd.f32 %v936, %v956
        %v969 = vadd.f32 %v937, %v961
        %v970 = vadd.f32 %v938, %v961
        %v971 = vld [vmem:[%s7] sm:$0xff]
        %v972 = vld [vmem:[%s7 + $0x8] sm:$0xff]
        %v973 = vld [vmem:[%s8] sm:$0xff]
        %v974 = vld [vmem:[%s8 + $0x8] sm:$0xff]
        %976 = vset.pattern.permute.xlu0 0
        %977 = vperm.xlu0 %976, %v973
        %v978 = vpop.permute.xlu0 %977
        %981 = vset.pattern.permute.xlu0 0
        %982 = vperm.xlu0 %981, %v974
        %v983 = vpop.permute.xlu0 %982
        %vm985 = vcmask 261120
        %v987 = vsel %vm985, %v971, 0
        %v990 = vsel %vm985, %v972, 0
        %992 = vmatprep.subr.mxu0 %v964
        %993 = vmatpush1.msra.mxu0 %v963
        %994 = vmatprep.subr.mxu0 %v966
        %995 = vmatpush1.msra.mxu0 %v965
        %996 = vmatprep.subr.mxu0 %v968
        %997 = vmatpush1.msra.mxu0 %v967
        %998 = vmatprep.subr.mxu0 %v970
        %999 = vmatpush1.msra.mxu0 %v969
        %1000 = vmatprep.subr.mxu0 0.0
        %1001 = vmatpush1.msra.mxu0 0.0
        %1002 = vmatprep.subr.mxu0 0.0
        %1003 = vmatpush1.msra.mxu0 0.0
        %1004 = vmatprep.subr.mxu0 0.0
        %1005 = vmatpush1.msra.mxu0 0.0
        %1006 = vmatprep.subr.mxu0 0.0
        %1007 = vmatpush1.msra.mxu0 0.0
        %1008 = vmatprep.subr.mxu0 0.0
        %1009 = vmatpush1.msra.mxu0 0.0
        %1010 = vmatprep.subr.mxu0 0.0
        %1011 = vmatpush1.msra.mxu0 0.0
        %1012 = vmatprep.subr.mxu0 0.0
        %1013 = vmatpush1.msra.mxu0 0.0
        %1014 = vmatprep.subr.mxu0 0.0
        %1015 = vmatpush1.msra.mxu0 0.0
        %1016 = vmatprep.subr.mxu0 0.0
        %1017 = vmatpush1.msra.mxu0 0.0
        %1018 = vmatprep.subr.mxu0 0.0
        %1019 = vmatpush1.msra.mxu0 0.0
        %1020 = vmatprep.subr.mxu0 0.0
        %1021 = vmatpush1.msra.mxu0 0.0
        %1022 = vmatprep.subr.mxu0 0.0
        %1023 = vmatpush1.msra.mxu0 0.0
        %1024 = vmatprep.subr.mxu0 0.0
        %1025 = vmatpush1.msra.mxu0 0.0
        %1026 = vmatprep.subr.mxu0 0.0
        %1027 = vmatpush1.msra.mxu0 0.0
        %1028 = vmatprep.subr.mxu0 0.0
        %1029 = vmatpush1.msra.mxu0 0.0
        %1030 = vmatprep.subr.mxu0 0.0
        %1031 = vmatpush1.msra.mxu0 0.0
        %1032 = vmatprep.subr.mxu0 0.0
        %1033 = vmatpush1.msra.mxu0 0.0
        %1034 = vmatprep.subr.mxu0 0.0
        %1035 = vmatpush1.msra.mxu0 0.0
        %1036 = vmatprep.subr.mxu0 0.0
        %1037 = vmatpush1.msra.mxu0 0.0
        %1038 = vmatprep.subr.mxu0 0.0
        %1039 = vmatpush1.msra.mxu0 0.0
        %1040 = vmatprep.subr.mxu0 0.0
        %1041 = vmatpush1.msra.mxu0 0.0
        %1042 = vmatprep.subr.mxu0 0.0
        %1043 = vmatpush1.msra.mxu0 0.0
        %1044 = vmatprep.subr.mxu0 0.0
        %1045 = vmatpush1.msra.mxu0 0.0
        %1046 = vmatprep.subr.mxu0 0.0
        %1047 = vmatpush1.msra.mxu0 0.0
        %1048 = vmatprep.subr.mxu0 0.0
        %1049 = vmatpush1.msra.mxu0 0.0
        %1050 = vmatprep.subr.mxu0 0.0
        %1051 = vmatpush1.msra.mxu0 0.0
        %1052 = vmatprep.subr.mxu0 0.0
        %1053 = vmatpush1.msra.mxu0 0.0
        %1054 = vmatprep.subr.mxu0 0.0
        %1055 = vmatpush1.msra.mxu0 0.0
        %1056 = vmatprep.mubr.f32.mxu0 0.0
        %1057 = vmatmul.mubr.f32.gmra.mrb[0].mxu0 %v987
        %v1058 = vpop.f32.mrb[0].mxu0
        %v1059 = vadd.f32 %v978, %v1058
        %v1060 = vpop.f32.mrb[0].mxu0
        %v1061 = vadd.f32 %v978, %v1060
        %1062 = vmatprep.mubr.f32.mxu0 0.0
        %1063 = vmatmul.mubr.f32.gmra.mrb[0].mxu0 %v990
        %v1064 = vpop.f32.mrb[0].mxu0
        %v1065 = vadd.f32 %v983, %v1064
        %v1066 = vpop.f32.mrb[0].mxu0
        %v1067 = vadd.f32 %v983, %v1066
        %1068 = vdwg.mxu0
        %v1069 = vadd.f32 %v1059, %v351
        %v1070 = vadd.f32 %v1061, %v352
        %v1071 = vadd.f32 %v1065, %v353
        %v1072 = vadd.f32 %v1067, %v354
        %1073 = vst [vmem:[%s350] sm:$0xff] %v1069
        %1074 = vst [vmem:[%s350 + $0x8] sm:$0xff] %v1070
        %1075 = vst [vmem:[%s350 + $0x10] sm:$0xff] %v1071
        %1076 = vst [vmem:[%s350 + $0x18] sm:$0xff] %v1072
        %s1077 = sand.u32 %s228, 1
        %s1078 = scalar_lea.sflag [#allocation4], %s1077
        %s1079 = sand.u32 %s228, 1
        %s1080 = smul.addr %s1079, 32
        %s1081 = scalar_lea.vmem [#allocation5], %s1080
        // Predicated region
        $region61: #{tpu_custom_call.1} parent=55 // pred_check
          %p1082 = pneg %p238
        $region62: #{tpu_custom_call.1} parent=55 // pred_check_branch
          %1084 = sbr.rel (%p1082) target = $region64
        $region63: #{tpu_custom_call.1} parent=55 // pred_region
          %s1086 = ssub.s32 512, 512
          %1087 = vsyncadd %s1078, %s1086
          %s1088 = smul.addr %s26, 4
          %s1089 = smul.addr %s1088, 128
          %s1090 = scalar_lea.hbm %s9, %s1089
          %s1091 = sshll.u32 %s1081, 4
          %s1092 = int_to_ptr.vmem [resolvable:$true] %s1091
          %1097 = dma.vmem_to_hbm [thread:$0]  %s1092, 512, %s1090, %s1078, 256, 256, 16
        $region64: #{tpu_custom_call.1} parent=55 // pred_fallthru
          _
      $region56: #{tpu_custom_call.1} parent=5 // pred_fallthru
        _
      %p1098 = scmp.le.s32.totalorder 2, %s21
      // Predicated region
      $region65: #{tpu_custom_call.1} parent=5 // pred_check
        %p1099 = pneg %p1098
      $region66: #{tpu_custom_call.1} parent=5 // pred_check_branch
        %1101 = sbr.rel (%p1099) target = $region68
      $region67: #{tpu_custom_call.1} parent=5 // pred_region
        %s1102 = ssub.s32 %s21, 2
        // Predicated region
        $region69: #{tpu_custom_call.1} parent=67 // pred_check
          %p1103 = pneg %p244
        $region70: #{tpu_custom_call.1} parent=67 // pred_check_branch
          %1105 = sbr.rel (%p1103) target = $region72
        $region71: #{tpu_custom_call.1} parent=67 // pred_region
          %s1106 = sand.u32 %s229, 1
          %s1107 = scalar_lea.sflag [#allocation4], %s1106
          %s1108 = sand.u32 %s229, 1
          %s1109 = smul.addr %s1108, 32
          %s1110 = scalar_lea.vmem [#allocation5], %s1109
          %1111 = dma.done %s1107, 512
        $region72: #{tpu_custom_call.1} parent=67 // pred_fallthru
          _
      $region68: #{tpu_custom_call.1} parent=5 // pred_fallthru
        _
    $region6: #{tpu_custom_call.1} parent=1 // loop_footer
      %s25 = sadd.s32 1, %s21
    $region7: #{tpu_custom_call.1} parent=1 // loop_footer_branch
      %20 = sbr.rel target = $region3
    $region8: #{tpu_custom_call.1} parent=1 // loop_exit
      _
    %1112 = vsyncpa [#allocation3], 1
    %s1113 = scalar_lea.sflag [#allocation3], 1
    %1114 = vsyncpa %s1113, 1
    %1115 = vsyncpa [#allocation4], 1
    %s1116 = scalar_lea.sflag [#allocation4], 1
    %1117 = vsyncpa %s1116, 1

</llo_original>
